<compile_context>
chip_gen: v5e
topology: v5e:2x2
jax: 0.10.0
libtpu: 0.0.40
codegen_flags: <defaults>
</compile_context>

<pallas_src>
import numpy as np
import jax
import jax.numpy as jnp
from jax.experimental import pallas as pl
from jax.experimental.pallas import tpu as pltpu


def _upsample_kernel(x_ref, halo_ref, g_ref, gv_ref, w_ref, b_ref, o_ref,
                     acc_ref, yh_ref):
    """One (batch, row-tile) grid step.

    x_ref    : (1, Cin, TH, W)      VMEM  input rows [i*TH, (i+1)*TH)
    halo_ref : (1, 1, Cin, W)       VMEM  input row (i+1)*TH (last image row for last tile)
    g_ref    : (W, Wo)              VMEM  horizontal bilinear interp matrix (constant)
    gv_ref   : (OBR, TH)            VMEM  vertical   bilinear interp matrix (constant)
    w_ref    : (Cout, Cin)          SMEM  1x1 conv weights (scalar reads)
    b_ref    : (Cout,)              SMEM  conv bias
    o_ref    : (1, Cout, OBR, Wo)   VMEM  output rows [2*i*TH, 2*i*TH + OBR)
    acc_ref  : (Cout*TH + Cout, W)  VMEM  f32 conv accumulator:
                 rows [co*TH, (co+1)*TH) : conv of this tile's rows, channel co
                 row  Cout*TH + co       : 0.5*(conv(tile's last row) + conv(halo row))
    yh_ref   : (Cout*TH + Cout, Wo) VMEM  horizontally interpolated rows
    """
    _, Cin, TH, W = x_ref.shape
    _, Cout, OBR, Wo = o_ref.shape
    multi = OBR == 2 * TH          # static: even-sized row tile vs whole image (odd OBR)

    def _hint(idx):
        if isinstance(idx, (int, np.integer)):
            return idx
        return pl.multiple_of(idx, 8) if TH % 8 == 0 else idx

    # ---- 1x1 conv as Cin scalar FMAs on the VPU (small channel counts; the MXU
    #      would be <1% utilized here).  No concatenate with the halo: the halo
    #      row's conv is a separate (1, W) vector.
    def conv_channel(co):
        acc = jnp.full((TH, W), b_ref[co], dtype=jnp.float32)
        hac = jnp.full((1, W), b_ref[co], dtype=jnp.float32)
        if Cin <= 32:
            for ci in range(Cin):
                wcc = w_ref[co, ci]
                acc = acc + wcc * x_ref[0, ci].astype(jnp.float32)
                hac = hac + wcc * halo_ref[0, 0, pl.ds(ci, 1), :].astype(jnp.float32)
        else:
            def body(ci, carry):
                a, h = carry
                wcc = w_ref[co, ci]
                a = a + wcc * x_ref[0, ci].astype(jnp.float32)
                h = h + wcc * halo_ref[0, 0, pl.ds(ci, 1), :].astype(jnp.float32)
                return a, h
            acc, hac = jax.lax.fori_loop(0, Cin, body, (acc, hac))
        acc_ref[pl.ds(_hint(co * TH), TH), :] = acc
        # Midpoint of the tile's last row and the halo row -> after the horizontal
        # matmul this row *is* the tile's last odd output row.
        acc_ref[pl.ds(Cout * TH + co, 1), :] = 0.5 * (acc[TH - 1:TH, :] + hac)

    if Cout <= 16:
        for co in range(Cout):
            conv_channel(co)
    else:
        jax.lax.fori_loop(0, Cout, lambda co, c: (conv_channel(co), c)[1], 0)

    # ---- horizontal bilinear upsample: ONE batched matmul for all channels
    #      (+ the per-channel halo-midpoint rows) on the MXU.
    yh_ref[...] = jnp.dot(acc_ref[...], g_ref[...], preferred_element_type=jnp.float32)

    gv = gv_ref[...]

    # ---- vertical bilinear upsample as a small constant matmul per channel
    #      (idle MXU): no row-interleave shuffle, no assembled temporary.
    def vert_channel(co):
        yh_co = yh_ref[pl.ds(_hint(co * TH), TH), :]                  # (TH, Wo)
        out = jnp.dot(gv, yh_co, preferred_element_type=jnp.float32)  # (OBR, Wo)
        o_ref[0, co] = out.astype(o_ref.dtype)
        if multi:
            # Tile's last odd output row needs the halo; for the last grid tile this
            # row is out of bounds and Pallas masks it on writeback.
            o_ref[0, co, pl.ds(OBR - 1, 1), :] = (
                yh_ref[pl.ds(Cout * TH + co, 1), :].astype(o_ref.dtype))

    if Cout <= 16:
        for co in range(Cout):
            vert_channel(co)
    else:
        jax.lax.fori_loop(0, Cout, lambda co, c: (vert_channel(co), c)[1], 0)


def _vmem_plan():
    """Per-generation VMEM limit for the pallas_call and a tile-selection budget."""
    try:
        cap = int(pltpu.get_tpu_info().vmem_capacity_bytes)
    except Exception:
        cap = 64 * 2**20                      # conservative (v7x-sized) fallback
    # v6e/v5e (128 MiB) -> 96 MiB limit; v7x (64 MiB) -> 48 MiB limit.
    limit = min(max(cap - (16 << 20), cap // 2), (cap * 3) // 4)
    budget = (limit * 85) // 100              # headroom for Mosaic internal scratch
    return limit, budget


def _step_vmem_bytes(TH, W, Cin, Cout, itemsize):
    """Per-grid-step VMEM need: double-buffered blocks + constants + scratch + temps."""
    Wo = 2 * W - 1
    OBR = 2 * TH
    rows = Cout * TH + Cout
    const = 2 * (W * Wo * 4 + OBR * TH * 4)                    # g + gv (double buffered)
    io = 2 * ((Cin * TH * W + Cin * W) * itemsize              # input tile + halo
              + Cout * OBR * Wo * itemsize)                    # output tile
    scratch = rows * W * 4 + rows * Wo * 4                     # conv acc + yh
    temps = OBR * Wo * 4 + TH * W * 4                          # per-channel out + conv regs
    return const + io + scratch + temps


def _choose_row_tile(N, H, W, Cin, Cout, itemsize, budget):
    """Largest multiple-of-8 divisor of H (capped at 128) that fits the budget,
    preferring tiles that give >= 4 grid steps (megacore / pipeline depth)."""
    if H % 8 != 0:
        return H                                   # small / odd heights: whole image per step
    fits = [t for t in range(8, min(H, 128) + 1, 8)
            if H % t == 0 and _step_vmem_bytes(t, W, Cin, Cout, itemsize) <= budget]
    if not fits:
        return 8
    deep = [t for t in fits if N * (H // t) >= 4]
    return max(deep) if deep else max(fits)


def upsample_forward(x, weight, bias, *, row_tile=None):
    """x: (N, Cin, H, W) NCHW; weight: (Cout, Cin) or (Cout, Cin, 1, 1); bias: (Cout,).
    Returns (N, Cout, 2H-1, 2W-1) NCHW, matching the PyTorch module."""
    N, Cin, H, W = x.shape
    Cout = bias.shape[0]
    Ho, Wo = 2 * H - 1, 2 * W - 1
    itemsize = x.dtype.itemsize

    w2 = jnp.asarray(weight, jnp.float32).reshape(Cout, Cin)
    b = jnp.asarray(bias, jnp.float32).reshape(Cout)

    vmem_limit, budget = _vmem_plan()
    TH = row_tile if row_tile is not None else _choose_row_tile(N, H, W, Cin, Cout,
                                                                itemsize, budget)
    assert H % TH == 0, "row tile must divide H"
    assert TH == H or TH % 8 == 0, "row tile must be a multiple of 8 (or the full height)"
    n_tiles = H // TH
    multi = n_tiles > 1
    OBR = 2 * TH if multi else Ho                 # output rows per grid step

    # Halo rows: input row (i+1)*TH for tile i. The last tile gets the image's last
    # row; it only feeds an output row that is masked on writeback.
    if multi:
        nxt = x[:, :, TH::TH, :]                                     # (N, Cin, n_tiles-1, W)
        halo = jnp.concatenate([nxt, x[:, :, H - 1:H, :]], axis=2)   # (N, Cin, n_tiles, W)
    else:
        halo = x[:, :, H - 1:H, :]
    halo = jnp.transpose(halo, (0, 2, 1, 3))                         # (N, n_tiles, Cin, W)

    # Constant horizontal interpolation matrix (align_corners=True, width 2W-1).
    g_np = np.zeros((W, Wo), np.float32)
    c = np.arange(W)
    g_np[c, 2 * c] = 1.0
    if W > 1:
        cc = np.arange(W - 1)
        g_np[cc, 2 * cc + 1] = 0.5
        g_np[cc + 1, 2 * cc + 1] = 0.5
    g = jnp.asarray(g_np)

    # Constant vertical interpolation matrix: even rows copy, odd rows average.
    # (The row-tile's very last odd row also needs the halo; the kernel overwrites it.)
    gv_np = np.zeros((OBR, TH), np.float32)
    for r in range(TH):
        if 2 * r < OBR:
            gv_np[2 * r, r] = 1.0
        if 2 * r + 1 < OBR:
            gv_np[2 * r + 1, r] = 0.5
            if r + 1 < TH:
                gv_np[2 * r + 1, r + 1] = 0.5
    gv = jnp.asarray(gv_np)

    cost = pl.CostEstimate(
        flops=int(2 * N * Cin * Cout * H * W                         # 1x1 conv
                  + 2 * N * Cout * (H + n_tiles) * W * Wo            # horizontal interp matmul
                  + 2 * N * n_tiles * Cout * OBR * TH * Wo),         # vertical interp matmuls
        transcendentals=0,
        bytes_accessed=int((N * Cin * H * W + N * Cout * Ho * Wo) * itemsize
                           + halo.size * itemsize
                           + (g.size + gv.size + w2.size + b.size) * 4),
    )

    out = pl.pallas_call(
        _upsample_kernel,
        out_shape=jax.ShapeDtypeStruct((N, Cout, Ho, Wo), x.dtype),
        grid_spec=pltpu.PrefetchScalarGridSpec(
            num_scalar_prefetch=0,
            grid=(N, n_tiles),
            in_specs=[
                pl.BlockSpec((1, Cin, TH, W), lambda n, i: (n, 0, i, 0)),
                pl.BlockSpec((1, 1, Cin, W), lambda n, i: (n, i, 0, 0)),
                pl.BlockSpec((W, Wo), lambda n, i: (0, 0)),
                pl.BlockSpec((OBR, TH), lambda n, i: (0, 0)),
                pl.BlockSpec(memory_space=pltpu.MemorySpace.SMEM),    # conv weights
                pl.BlockSpec(memory_space=pltpu.MemorySpace.SMEM),    # conv bias
            ],
            out_specs=pl.BlockSpec((1, Cout, OBR, Wo), lambda n, i: (n, 0, i, 0)),
            scratch_shapes=[
                pltpu.VMEM((Cout * TH + Cout, W), jnp.float32),       # conv accumulator
                pltpu.VMEM((Cout * TH + Cout, Wo), jnp.float32),      # horizontal interp result
            ],
        ),
        compiler_params=pltpu.CompilerParams(
            dimension_semantics=("parallel", "parallel"),
            vmem_limit_bytes=int(vmem_limit),
        ),
        cost_estimate=cost,
    )(x, halo, g, gv, w2, b)
    return out


def _reference(x, weight, bias):
    """Pure-JAX reference: 1x1 conv + bilinear(align_corners=True) to (2H-1, 2W-1)."""
    N, Cin, H, W = x.shape
    Cout = bias.shape[0]
    w2 = jnp.asarray(weight, jnp.float32).reshape(Cout, Cin)
    y = jnp.einsum("nchw,oc->nohw", x, w2) + bias[None, :, None, None]
    Ho, Wo = 2 * H - 1, 2 * W - 1
    yh = jnp.zeros((N, Cout, H, Wo), y.dtype).at[..., 0::2].set(y)
    if W > 1:
        yh = yh.at[..., 1::2].set(0.5 * (y[..., :-1] + y[..., 1:]))
    out = jnp.zeros((N, Cout, Ho, Wo), y.dtype).at[..., 0::2, :].set(yh)
    if H > 1:
        out = out.at[..., 1::2, :].set(0.5 * (yh[..., :-1, :] + yh[..., 1:, :]))
    return out


if __name__ == "__main__":
    key = jax.random.PRNGKey(0)
    k_x, k_w, k_b = jax.random.split(key, 3)

    N, Cin, Cout, H, W = 2, 4, 8, 16, 16
    x = jax.random.normal(k_x, (N, Cin, H, W), dtype=jnp.float32)
    # Deterministic synthetic parameters for nn.Conv2d(Cin, Cout, kernel_size=1).
    weight = jax.random.normal(k_w, (Cout, Cin), dtype=jnp.float32) * 0.1
    bias = jax.random.normal(k_b, (Cout,), dtype=jnp.float32) * 0.1

    ref = _reference(x, weight, bias)

    # Auto-tiled path (picks TH=8 here -> multi-tile: exercises the halo handling and
    # the masked out-of-bounds last output row).
    out = jax.block_until_ready(upsample_forward(x, weight, bias))
    assert out.shape == (N, Cout, 2 * H - 1, 2 * W - 1)
    assert jnp.allclose(out, ref, atol=1e-5, rtol=1e-5)

    # Whole-image single-tile path (odd-sized output block, no halo fix-up row).
    out_full = jax.block_until_ready(upsample_forward(x, weight, bias, row_tile=H))
    assert jnp.allclose(out_full, ref, atol=1e-5, rtol=1e-5)

    print("KERNEL_OK")
</pallas_src>

<mosaic_0001>
module attributes {stable_mosaic.version = 11 : i64} {
  func.func @_upsample_kernel(%arg0: i32, %arg1: i32, %arg2: memref<1x4x8x16xf32, #tpu.memory_space<vmem>>, %arg3: memref<1x1x4x16xf32, #tpu.memory_space<vmem>>, %arg4: memref<16x31xf32, #tpu.memory_space<vmem>>, %arg5: memref<16x8xf32, #tpu.memory_space<vmem>>, %arg6: memref<8x4xf32, #tpu.memory_space<smem>>, %arg7: memref<8xf32, #tpu.memory_space<smem>>, %arg8: memref<1x8x16x31xf32, #tpu.memory_space<vmem>>, %arg9: memref<72x16xf32, #tpu.memory_space<vmem>>, %arg10: memref<72x31xf32, #tpu.memory_space<vmem>>) attributes {dimension_semantics = [#tpu.dimension_semantics<parallel>, #tpu.dimension_semantics<parallel>], iteration_bounds = array<i64: 2, 2>, scalar_prefetch = 0 : i64, scratch_operands = 2 : i64, tpu.core_type = #tpu.core_type<tc>, window_params = [{transform_indices = @transform_0, window_bounds = array<i64: 1, 4, 8, 16>}, {transform_indices = @transform_1, window_bounds = array<i64: 1, 1, 4, 16>}, {pipeline_mode = #tpu.pipeline_mode<synchronous>, transform_indices = @transform_2, window_bounds = array<i64: 16, 31>}, {pipeline_mode = #tpu.pipeline_mode<synchronous>, transform_indices = @transform_3, window_bounds = array<i64: 16, 8>}, {transform_indices = @transform_4, window_bounds = array<i64: 8, 4>}, {transform_indices = @transform_5, window_bounds = array<i64: 8>}, {transform_indices = @transform_6, window_bounds = array<i64: 1, 8, 16, 31>}]} {
    %c0 = arith.constant 0 : index
    %0 = memref.load %arg7[%c0] : memref<8xf32, #tpu.memory_space<smem>>
    %1 = vector.broadcast %0 : f32 to vector<8x16xf32>
    %c0_0 = arith.constant 0 : index
    %2 = memref.load %arg7[%c0_0] : memref<8xf32, #tpu.memory_space<smem>>
    %3 = vector.broadcast %2 : f32 to vector<1x16xf32>
    %c0_1 = arith.constant 0 : index
    %c0_2 = arith.constant 0 : index
    %4 = memref.load %arg6[%c0_1, %c0_2] : memref<8x4xf32, #tpu.memory_space<smem>>
    %c0_3 = arith.constant 0 : index
    %c0_4 = arith.constant 0 : index
    %c0_5 = arith.constant 0 : index
    %c0_6 = arith.constant 0 : index
    %5 = vector.load %arg2[%c0_3, %c0_4, %c0_5, %c0_6] : memref<1x4x8x16xf32, #tpu.memory_space<vmem>>, vector<1x1x8x16xf32>
    %6 = vector.shape_cast %5 : vector<1x1x8x16xf32> to vector<8x16xf32>
    %7 = vector.broadcast %4 : f32 to vector<8x16xf32>
    %8 = arith.mulf %7, %6 : vector<8x16xf32>
    %9 = arith.addf %1, %8 : vector<8x16xf32>
    %c0_7 = arith.constant 0 : index
    %c0_8 = arith.constant 0 : index
    %c0_9 = arith.constant 0 : index
    %c0_10 = arith.constant 0 : index
    %10 = vector.load %arg3[%c0_7, %c0_8, %c0_9, %c0_10] : memref<1x1x4x16xf32, #tpu.memory_space<vmem>>, vector<1x1x1x16xf32>
    %11 = vector.shape_cast %10 : vector<1x1x1x16xf32> to vector<1x16xf32>
    %12 = vector.broadcast %4 : f32 to vector<1x16xf32>
    %13 = arith.mulf %12, %11 : vector<1x16xf32>
    %14 = arith.addf %3, %13 : vector<1x16xf32>
    %c0_11 = arith.constant 0 : index
    %c1 = arith.constant 1 : index
    %15 = memref.load %arg6[%c0_11, %c1] : memref<8x4xf32, #tpu.memory_space<smem>>
    %c0_12 = arith.constant 0 : index
    %c1_13 = arith.constant 1 : index
    %c0_14 = arith.constant 0 : index
    %c0_15 = arith.constant 0 : index
    %16 = vector.load %arg2[%c0_12, %c1_13, %c0_14, %c0_15] : memref<1x4x8x16xf32, #tpu.memory_space<vmem>>, vector<1x1x8x16xf32>
    %17 = vector.shape_cast %16 : vector<1x1x8x16xf32> to vector<8x16xf32>
    %18 = vector.broadcast %15 : f32 to vector<8x16xf32>
    %19 = arith.mulf %18, %17 : vector<8x16xf32>
    %20 = arith.addf %9, %19 : vector<8x16xf32>
    %c0_16 = arith.constant 0 : index
    %c0_17 = arith.constant 0 : index
    %c1_18 = arith.constant 1 : index
    %c0_19 = arith.constant 0 : index
    %21 = vector.load %arg3[%c0_16, %c0_17, %c1_18, %c0_19] : memref<1x1x4x16xf32, #tpu.memory_space<vmem>>, vector<1x1x1x16xf32>
    %22 = vector.shape_cast %21 : vector<1x1x1x16xf32> to vector<1x16xf32>
    %23 = vector.broadcast %15 : f32 to vector<1x16xf32>
    %24 = arith.mulf %23, %22 : vector<1x16xf32>
    %25 = arith.addf %14, %24 : vector<1x16xf32>
    %c0_20 = arith.constant 0 : index
    %c2 = arith.constant 2 : index
    %26 = memref.load %arg6[%c0_20, %c2] : memref<8x4xf32, #tpu.memory_space<smem>>
    %c0_21 = arith.constant 0 : index
    %c2_22 = arith.constant 2 : index
    %c0_23 = arith.constant 0 : index
    %c0_24 = arith.constant 0 : index
    %27 = vector.load %arg2[%c0_21, %c2_22, %c0_23, %c0_24] : memref<1x4x8x16xf32, #tpu.memory_space<vmem>>, vector<1x1x8x16xf32>
    %28 = vector.shape_cast %27 : vector<1x1x8x16xf32> to vector<8x16xf32>
    %29 = vector.broadcast %26 : f32 to vector<8x16xf32>
    %30 = arith.mulf %29, %28 : vector<8x16xf32>
    %31 = arith.addf %20, %30 : vector<8x16xf32>
    %c0_25 = arith.constant 0 : index
    %c0_26 = arith.constant 0 : index
    %c2_27 = arith.constant 2 : index
    %c0_28 = arith.constant 0 : index
    %32 = vector.load %arg3[%c0_25, %c0_26, %c2_27, %c0_28] : memref<1x1x4x16xf32, #tpu.memory_space<vmem>>, vector<1x1x1x16xf32>
    %33 = vector.shape_cast %32 : vector<1x1x1x16xf32> to vector<1x16xf32>
    %34 = vector.broadcast %26 : f32 to vector<1x16xf32>
    %35 = arith.mulf %34, %33 : vector<1x16xf32>
    %36 = arith.addf %25, %35 : vector<1x16xf32>
    %c0_29 = arith.constant 0 : index
    %c3 = arith.constant 3 : index
    %37 = memref.load %arg6[%c0_29, %c3] : memref<8x4xf32, #tpu.memory_space<smem>>
    %c0_30 = arith.constant 0 : index
    %c3_31 = arith.constant 3 : index
    %c0_32 = arith.constant 0 : index
    %c0_33 = arith.constant 0 : index
    %38 = vector.load %arg2[%c0_30, %c3_31, %c0_32, %c0_33] : memref<1x4x8x16xf32, #tpu.memory_space<vmem>>, vector<1x1x8x16xf32>
    %39 = vector.shape_cast %38 : vector<1x1x8x16xf32> to vector<8x16xf32>
    %40 = vector.broadcast %37 : f32 to vector<8x16xf32>
    %41 = arith.mulf %40, %39 : vector<8x16xf32>
    %42 = arith.addf %31, %41 : vector<8x16xf32>
    %c0_34 = arith.constant 0 : index
    %c0_35 = arith.constant 0 : index
    %c3_36 = arith.constant 3 : index
    %c0_37 = arith.constant 0 : index
    %43 = vector.load %arg3[%c0_34, %c0_35, %c3_36, %c0_37] : memref<1x1x4x16xf32, #tpu.memory_space<vmem>>, vector<1x1x1x16xf32>
    %44 = vector.shape_cast %43 : vector<1x1x1x16xf32> to vector<1x16xf32>
    %45 = vector.broadcast %37 : f32 to vector<1x16xf32>
    %46 = arith.mulf %45, %44 : vector<1x16xf32>
    %47 = arith.addf %36, %46 : vector<1x16xf32>
    %c0_38 = arith.constant 0 : index
    %c0_39 = arith.constant 0 : index
    %48 = vector.load %arg9[%c0_38, %c0_39] : memref<72x16xf32, #tpu.memory_space<vmem>>, vector<8x16xf32>
    tpu.vector_store %arg9[%c0_38, %c0_39], %42 {strides = array<i32>} : memref<72x16xf32, #tpu.memory_space<vmem>>, vector<8x16xf32>,
    %49 = vector.extract_strided_slice %42 {offsets = [7, 0], sizes = [1, 16], strides = [1, 1]} : vector<8x16xf32> to vector<1x16xf32>
    %50 = arith.addf %49, %47 : vector<1x16xf32>
    %cst = arith.constant 5.000000e-01 : f32
    %51 = vector.broadcast %cst : f32 to vector<1x16xf32>
    %52 = arith.mulf %51, %50 : vector<1x16xf32>
    %c64 = arith.constant 64 : index
    %c0_40 = arith.constant 0 : index
    %53 = vector.load %arg9[%c64, %c0_40] : memref<72x16xf32, #tpu.memory_space<vmem>>, vector<1x16xf32>
    tpu.vector_store %arg9[%c64, %c0_40], %52 {strides = array<i32>} : memref<72x16xf32, #tpu.memory_space<vmem>>, vector<1x16xf32>,
    %c1_41 = arith.constant 1 : index
    %54 = memref.load %arg7[%c1_41] : memref<8xf32, #tpu.memory_space<smem>>
    %55 = vector.broadcast %54 : f32 to vector<8x16xf32>
    %c1_42 = arith.constant 1 : index
    %56 = memref.load %arg7[%c1_42] : memref<8xf32, #tpu.memory_space<smem>>
    %57 = vector.broadcast %56 : f32 to vector<1x16xf32>
    %c1_43 = arith.constant 1 : index
    %c0_44 = arith.constant 0 : index
    %58 = memref.load %arg6[%c1_43, %c0_44] : memref<8x4xf32, #tpu.memory_space<smem>>
    %c0_45 = arith.constant 0 : index
    %c0_46 = arith.constant 0 : index
    %c0_47 = arith.constant 0 : index
    %c0_48 = arith.constant 0 : index
    %59 = vector.load %arg2[%c0_45, %c0_46, %c0_47, %c0_48] : memref<1x4x8x16xf32, #tpu.memory_space<vmem>>, vector<1x1x8x16xf32>
    %60 = vector.shape_cast %59 : vector<1x1x8x16xf32> to vector<8x16xf32>
    %61 = vector.broadcast %58 : f32 to vector<8x16xf32>
    %62 = arith.mulf %61, %60 : vector<8x16xf32>
    %63 = arith.addf %55, %62 : vector<8x16xf32>
    %c0_49 = arith.constant 0 : index
    %c0_50 = arith.constant 0 : index
    %c0_51 = arith.constant 0 : index
    %c0_52 = arith.constant 0 : index
    %64 = vector.load %arg3[%c0_49, %c0_50, %c0_51, %c0_52] : memref<1x1x4x16xf32, #tpu.memory_space<vmem>>, vector<1x1x1x16xf32>
    %65 = vector.shape_cast %64 : vector<1x1x1x16xf32> to vector<1x16xf32>
    %66 = vector.broadcast %58 : f32 to vector<1x16xf32>
    %67 = arith.mulf %66, %65 : vector<1x16xf32>
    %68 = arith.addf %57, %67 : vector<1x16xf32>
    %c1_53 = arith.constant 1 : index
    %c1_54 = arith.constant 1 : index
    %69 = memref.load %arg6[%c1_53, %c1_54] : memref<8x4xf32, #tpu.memory_space<smem>>
    %c0_55 = arith.constant 0 : index
    %c1_56 = arith.constant 1 : index
    %c0_57 = arith.constant 0 : index
    %c0_58 = arith.constant 0 : index
    %70 = vector.load %arg2[%c0_55, %c1_56, %c0_57, %c0_58] : memref<1x4x8x16xf32, #tpu.memory_space<vmem>>, vector<1x1x8x16xf32>
    %71 = vector.shape_cast %70 : vector<1x1x8x16xf32> to vector<8x16xf32>
    %72 = vector.broadcast %69 : f32 to vector<8x16xf32>
    %73 = arith.mulf %72, %71 : vector<8x16xf32>
    %74 = arith.addf %63, %73 : vector<8x16xf32>
    %c0_59 = arith.constant 0 : index
    %c0_60 = arith.constant 0 : index
    %c1_61 = arith.constant 1 : index
    %c0_62 = arith.constant 0 : index
    %75 = vector.load %arg3[%c0_59, %c0_60, %c1_61, %c0_62] : memref<1x1x4x16xf32, #tpu.memory_space<vmem>>, vector<1x1x1x16xf32>
    %76 = vector.shape_cast %75 : vector<1x1x1x16xf32> to vector<1x16xf32>
    %77 = vector.broadcast %69 : f32 to vector<1x16xf32>
    %78 = arith.mulf %77, %76 : vector<1x16xf32>
    %79 = arith.addf %68, %78 : vector<1x16xf32>
    %c1_63 = arith.constant 1 : index
    %c2_64 = arith.constant 2 : index
    %80 = memref.load %arg6[%c1_63, %c2_64] : memref<8x4xf32, #tpu.memory_space<smem>>
    %c0_65 = arith.constant 0 : index
    %c2_66 = arith.constant 2 : index
    %c0_67 = arith.constant 0 : index
    %c0_68 = arith.constant 0 : index
    %81 = vector.load %arg2[%c0_65, %c2_66, %c0_67, %c0_68] : memref<1x4x8x16xf32, #tpu.memory_space<vmem>>, vector<1x1x8x16xf32>
    %82 = vector.shape_cast %81 : vector<1x1x8x16xf32> to vector<8x16xf32>
    %83 = vector.broadcast %80 : f32 to vector<8x16xf32>
    %84 = arith.mulf %83, %82 : vector<8x16xf32>
    %85 = arith.addf %74, %84 : vector<8x16xf32>
    %c0_69 = arith.constant 0 : index
    %c0_70 = arith.constant 0 : index
    %c2_71 = arith.constant 2 : index
    %c0_72 = arith.constant 0 : index
    %86 = vector.load %arg3[%c0_69, %c0_70, %c2_71, %c0_72] : memref<1x1x4x16xf32, #tpu.memory_space<vmem>>, vector<1x1x1x16xf32>
    %87 = vector.shape_cast %86 : vector<1x1x1x16xf32> to vector<1x16xf32>
    %88 = vector.broadcast %80 : f32 to vector<1x16xf32>
    %89 = arith.mulf %88, %87 : vector<1x16xf32>
    %90 = arith.addf %79, %89 : vector<1x16xf32>
    %c1_73 = arith.constant 1 : index
    %c3_74 = arith.constant 3 : index
    %91 = memref.load %arg6[%c1_73, %c3_74] : memref<8x4xf32, #tpu.memory_space<smem>>
    %c0_75 = arith.constant 0 : index
    %c3_76 = arith.constant 3 : index
    %c0_77 = arith.constant 0 : index
    %c0_78 = arith.constant 0 : index
    %92 = vector.load %arg2[%c0_75, %c3_76, %c0_77, %c0_78] : memref<1x4x8x16xf32, #tpu.memory_space<vmem>>, vector<1x1x8x16xf32>
    %93 = vector.shape_cast %92 : vector<1x1x8x16xf32> to vector<8x16xf32>
    %94 = vector.broadcast %91 : f32 to vector<8x16xf32>
    %95 = arith.mulf %94, %93 : vector<8x16xf32>
    %96 = arith.addf %85, %95 : vector<8x16xf32>
    %c0_79 = arith.constant 0 : index
    %c0_80 = arith.constant 0 : index
    %c3_81 = arith.constant 3 : index
    %c0_82 = arith.constant 0 : index
    %97 = vector.load %arg3[%c0_79, %c0_80, %c3_81, %c0_82] : memref<1x1x4x16xf32, #tpu.memory_space<vmem>>, vector<1x1x1x16xf32>
    %98 = vector.shape_cast %97 : vector<1x1x1x16xf32> to vector<1x16xf32>
    %99 = vector.broadcast %91 : f32 to vector<1x16xf32>
    %100 = arith.mulf %99, %98 : vector<1x16xf32>
    %101 = arith.addf %90, %100 : vector<1x16xf32>
    %c8 = arith.constant 8 : index
    %c0_83 = arith.constant 0 : index
    %102 = vector.load %arg9[%c8, %c0_83] : memref<72x16xf32, #tpu.memory_space<vmem>>, vector<8x16xf32>
    tpu.vector_store %arg9[%c8, %c0_83], %96 {strides = array<i32>} : memref<72x16xf32, #tpu.memory_space<vmem>>, vector<8x16xf32>,
    %103 = vector.extract_strided_slice %96 {offsets = [7, 0], sizes = [1, 16], strides = [1, 1]} : vector<8x16xf32> to vector<1x16xf32>
    %104 = arith.addf %103, %101 : vector<1x16xf32>
    %cst_84 = arith.constant 5.000000e-01 : f32
    %105 = vector.broadcast %cst_84 : f32 to vector<1x16xf32>
    %106 = arith.mulf %105, %104 : vector<1x16xf32>
    %c65 = arith.constant 65 : index
    %c0_85 = arith.constant 0 : index
    %107 = vector.load %arg9[%c65, %c0_85] : memref<72x16xf32, #tpu.memory_space<vmem>>, vector<1x16xf32>
    tpu.vector_store %arg9[%c65, %c0_85], %106 {strides = array<i32>} : memref<72x16xf32, #tpu.memory_space<vmem>>, vector<1x16xf32>,
    %c2_86 = arith.constant 2 : index
    %108 = memref.load %arg7[%c2_86] : memref<8xf32, #tpu.memory_space<smem>>
    %109 = vector.broadcast %108 : f32 to vector<8x16xf32>
    %c2_87 = arith.constant 2 : index
    %110 = memref.load %arg7[%c2_87] : memref<8xf32, #tpu.memory_space<smem>>
    %111 = vector.broadcast %110 : f32 to vector<1x16xf32>
    %c2_88 = arith.constant 2 : index
    %c0_89 = arith.constant 0 : index
    %112 = memref.load %arg6[%c2_88, %c0_89] : memref<8x4xf32, #tpu.memory_space<smem>>
    %c0_90 = arith.constant 0 : index
    %c0_91 = arith.constant 0 : index
    %c0_92 = arith.constant 0 : index
    %c0_93 = arith.constant 0 : index
    %113 = vector.load %arg2[%c0_90, %c0_91, %c0_92, %c0_93] : memref<1x4x8x16xf32, #tpu.memory_space<vmem>>, vector<1x1x8x16xf32>
    %114 = vector.shape_cast %113 : vector<1x1x8x16xf32> to vector<8x16xf32>
    %115 = vector.broadcast %112 : f32 to vector<8x16xf32>
    %116 = arith.mulf %115, %114 : vector<8x16xf32>
    %117 = arith.addf %109, %116 : vector<8x16xf32>
    %c0_94 = arith.constant 0 : index
    %c0_95 = arith.constant 0 : index
    %c0_96 = arith.constant 0 : index
    %c0_97 = arith.constant 0 : index
    %118 = vector.load %arg3[%c0_94, %c0_95, %c0_96, %c0_97] : memref<1x1x4x16xf32, #tpu.memory_space<vmem>>, vector<1x1x1x16xf32>
    %119 = vector.shape_cast %118 : vector<1x1x1x16xf32> to vector<1x16xf32>
    %120 = vector.broadcast %112 : f32 to vector<1x16xf32>
    %121 = arith.mulf %120, %119 : vector<1x16xf32>
    %122 = arith.addf %111, %121 : vector<1x16xf32>
    %c2_98 = arith.constant 2 : index
    %c1_99 = arith.constant 1 : index
    %123 = memref.load %arg6[%c2_98, %c1_99] : memref<8x4xf32, #tpu.memory_space<smem>>
    %c0_100 = arith.constant 0 : index
    %c1_101 = arith.constant 1 : index
    %c0_102 = arith.constant 0 : index
    %c0_103 = arith.constant 0 : index
    %124 = vector.load %arg2[%c0_100, %c1_101, %c0_102, %c0_103] : memref<1x4x8x16xf32, #tpu.memory_space<vmem>>, vector<1x1x8x16xf32>
    %125 = vector.shape_cast %124 : vector<1x1x8x16xf32> to vector<8x16xf32>
    %126 = vector.broadcast %123 : f32 to vector<8x16xf32>
    %127 = arith.mulf %126, %125 : vector<8x16xf32>
    %128 = arith.addf %117, %127 : vector<8x16xf32>
    %c0_104 = arith.constant 0 : index
    %c0_105 = arith.constant 0 : index
    %c1_106 = arith.constant 1 : index
    %c0_107 = arith.constant 0 : index
    %129 = vector.load %arg3[%c0_104, %c0_105, %c1_106, %c0_107] : memref<1x1x4x16xf32, #tpu.memory_space<vmem>>, vector<1x1x1x16xf32>
    %130 = vector.shape_cast %129 : vector<1x1x1x16xf32> to vector<1x16xf32>
    %131 = vector.broadcast %123 : f32 to vector<1x16xf32>
    %132 = arith.mulf %131, %130 : vector<1x16xf32>
    %133 = arith.addf %122, %132 : vector<1x16xf32>
    %c2_108 = arith.constant 2 : index
    %c2_109 = arith.constant 2 : index
    %134 = memref.load %arg6[%c2_108, %c2_109] : memref<8x4xf32, #tpu.memory_space<smem>>
    %c0_110 = arith.constant 0 : index
    %c2_111 = arith.constant 2 : index
    %c0_112 = arith.constant 0 : index
    %c0_113 = arith.constant 0 : index
    %135 = vector.load %arg2[%c0_110, %c2_111, %c0_112, %c0_113] : memref<1x4x8x16xf32, #tpu.memory_space<vmem>>, vector<1x1x8x16xf32>
    %136 = vector.shape_cast %135 : vector<1x1x8x16xf32> to vector<8x16xf32>
    %137 = vector.broadcast %134 : f32 to vector<8x16xf32>
    %138 = arith.mulf %137, %136 : vector<8x16xf32>
    %139 = arith.addf %128, %138 : vector<8x16xf32>
    %c0_114 = arith.constant 0 : index
    %c0_115 = arith.constant 0 : index
    %c2_116 = arith.constant 2 : index
    %c0_117 = arith.constant 0 : index
    %140 = vector.load %arg3[%c0_114, %c0_115, %c2_116, %c0_117] : memref<1x1x4x16xf32, #tpu.memory_space<vmem>>, vector<1x1x1x16xf32>
    %141 = vector.shape_cast %140 : vector<1x1x1x16xf32> to vector<1x16xf32>
    %142 = vector.broadcast %134 : f32 to vector<1x16xf32>
    %143 = arith.mulf %142, %141 : vector<1x16xf32>
    %144 = arith.addf %133, %143 : vector<1x16xf32>
    %c2_118 = arith.constant 2 : index
    %c3_119 = arith.constant 3 : index
    %145 = memref.load %arg6[%c2_118, %c3_119] : memref<8x4xf32, #tpu.memory_space<smem>>
    %c0_120 = arith.constant 0 : index
    %c3_121 = arith.constant 3 : index
    %c0_122 = arith.constant 0 : index
    %c0_123 = arith.constant 0 : index
    %146 = vector.load %arg2[%c0_120, %c3_121, %c0_122, %c0_123] : memref<1x4x8x16xf32, #tpu.memory_space<vmem>>, vector<1x1x8x16xf32>
    %147 = vector.shape_cast %146 : vector<1x1x8x16xf32> to vector<8x16xf32>
    %148 = vector.broadcast %145 : f32 to vector<8x16xf32>
    %149 = arith.mulf %148, %147 : vector<8x16xf32>
    %150 = arith.addf %139, %149 : vector<8x16xf32>
    %c0_124 = arith.constant 0 : index
    %c0_125 = arith.constant 0 : index
    %c3_126 = arith.constant 3 : index
    %c0_127 = arith.constant 0 : index
    %151 = vector.load %arg3[%c0_124, %c0_125, %c3_126, %c0_127] : memref<1x1x4x16xf32, #tpu.memory_space<vmem>>, vector<1x1x1x16xf32>
    %152 = vector.shape_cast %151 : vector<1x1x1x16xf32> to vector<1x16xf32>
    %153 = vector.broadcast %145 : f32 to vector<1x16xf32>
    %154 = arith.mulf %153, %152 : vector<1x16xf32>
    %155 = arith.addf %144, %154 : vector<1x16xf32>
    %c16 = arith.constant 16 : index
    %c0_128 = arith.constant 0 : index
    %156 = vector.load %arg9[%c16, %c0_128] : memref<72x16xf32, #tpu.memory_space<vmem>>, vector<8x16xf32>
    tpu.vector_store %arg9[%c16, %c0_128], %150 {strides = array<i32>} : memref<72x16xf32, #tpu.memory_space<vmem>>, vector<8x16xf32>,
    %157 = vector.extract_strided_slice %150 {offsets = [7, 0], sizes = [1, 16], strides = [1, 1]} : vector<8x16xf32> to vector<1x16xf32>
    %158 = arith.addf %157, %155 : vector<1x16xf32>
    %cst_129 = arith.constant 5.000000e-01 : f32
    %159 = vector.broadcast %cst_129 : f32 to vector<1x16xf32>
    %160 = arith.mulf %159, %158 : vector<1x16xf32>
    %c66 = arith.constant 66 : index
    %c0_130 = arith.constant 0 : index
    %161 = vector.load %arg9[%c66, %c0_130] : memref<72x16xf32, #tpu.memory_space<vmem>>, vector<1x16xf32>
    tpu.vector_store %arg9[%c66, %c0_130], %160 {strides = array<i32>} : memref<72x16xf32, #tpu.memory_space<vmem>>, vector<1x16xf32>,
    %c3_131 = arith.constant 3 : index
    %162 = memref.load %arg7[%c3_131] : memref<8xf32, #tpu.memory_space<smem>>
    %163 = vector.broadcast %162 : f32 to vector<8x16xf32>
    %c3_132 = arith.constant 3 : index
    %164 = memref.load %arg7[%c3_132] : memref<8xf32, #tpu.memory_space<smem>>
    %165 = vector.broadcast %164 : f32 to vector<1x16xf32>
    %c3_133 = arith.constant 3 : index
    %c0_134 = arith.constant 0 : index
    %166 = memref.load %arg6[%c3_133, %c0_134] : memref<8x4xf32, #tpu.memory_space<smem>>
    %c0_135 = arith.constant 0 : index
    %c0_136 = arith.constant 0 : index
    %c0_137 = arith.constant 0 : index
    %c0_138 = arith.constant 0 : index
    %167 = vector.load %arg2[%c0_135, %c0_136, %c0_137, %c0_138] : memref<1x4x8x16xf32, #tpu.memory_space<vmem>>, vector<1x1x8x16xf32>
    %168 = vector.shape_cast %167 : vector<1x1x8x16xf32> to vector<8x16xf32>
    %169 = vector.broadcast %166 : f32 to vector<8x16xf32>
    %170 = arith.mulf %169, %168 : vector<8x16xf32>
    %171 = arith.addf %163, %170 : vector<8x16xf32>
    %c0_139 = arith.constant 0 : index
    %c0_140 = arith.constant 0 : index
    %c0_141 = arith.constant 0 : index
    %c0_142 = arith.constant 0 : index
    %172 = vector.load %arg3[%c0_139, %c0_140, %c0_141, %c0_142] : memref<1x1x4x16xf32, #tpu.memory_space<vmem>>, vector<1x1x1x16xf32>
    %173 = vector.shape_cast %172 : vector<1x1x1x16xf32> to vector<1x16xf32>
    %174 = vector.broadcast %166 : f32 to vector<1x16xf32>
    %175 = arith.mulf %174, %173 : vector<1x16xf32>
    %176 = arith.addf %165, %175 : vector<1x16xf32>
    %c3_143 = arith.constant 3 : index
    %c1_144 = arith.constant 1 : index
    %177 = memref.load %arg6[%c3_143, %c1_144] : memref<8x4xf32, #tpu.memory_space<smem>>
    %c0_145 = arith.constant 0 : index
    %c1_146 = arith.constant 1 : index
    %c0_147 = arith.constant 0 : index
    %c0_148 = arith.constant 0 : index
    %178 = vector.load %arg2[%c0_145, %c1_146, %c0_147, %c0_148] : memref<1x4x8x16xf32, #tpu.memory_space<vmem>>, vector<1x1x8x16xf32>
    %179 = vector.shape_cast %178 : vector<1x1x8x16xf32> to vector<8x16xf32>
    %180 = vector.broadcast %177 : f32 to vector<8x16xf32>
    %181 = arith.mulf %180, %179 : vector<8x16xf32>
    %182 = arith.addf %171, %181 : vector<8x16xf32>
    %c0_149 = arith.constant 0 : index
    %c0_150 = arith.constant 0 : index
    %c1_151 = arith.constant 1 : index
    %c0_152 = arith.constant 0 : index
    %183 = vector.load %arg3[%c0_149, %c0_150, %c1_151, %c0_152] : memref<1x1x4x16xf32, #tpu.memory_space<vmem>>, vector<1x1x1x16xf32>
    %184 = vector.shape_cast %183 : vector<1x1x1x16xf32> to vector<1x16xf32>
    %185 = vector.broadcast %177 : f32 to vector<1x16xf32>
    %186 = arith.mulf %185, %184 : vector<1x16xf32>
    %187 = arith.addf %176, %186 : vector<1x16xf32>
    %c3_153 = arith.constant 3 : index
    %c2_154 = arith.constant 2 : index
    %188 = memref.load %arg6[%c3_153, %c2_154] : memref<8x4xf32, #tpu.memory_space<smem>>
    %c0_155 = arith.constant 0 : index
    %c2_156 = arith.constant 2 : index
    %c0_157 = arith.constant 0 : index
    %c0_158 = arith.constant 0 : index
    %189 = vector.load %arg2[%c0_155, %c2_156, %c0_157, %c0_158] : memref<1x4x8x16xf32, #tpu.memory_space<vmem>>, vector<1x1x8x16xf32>
    %190 = vector.shape_cast %189 : vector<1x1x8x16xf32> to vector<8x16xf32>
    %191 = vector.broadcast %188 : f32 to vector<8x16xf32>
    %192 = arith.mulf %191, %190 : vector<8x16xf32>
    %193 = arith.addf %182, %192 : vector<8x16xf32>
    %c0_159 = arith.constant 0 : index
    %c0_160 = arith.constant 0 : index
    %c2_161 = arith.constant 2 : index
    %c0_162 = arith.constant 0 : index
    %194 = vector.load %arg3[%c0_159, %c0_160, %c2_161, %c0_162] : memref<1x1x4x16xf32, #tpu.memory_space<vmem>>, vector<1x1x1x16xf32>
    %195 = vector.shape_cast %194 : vector<1x1x1x16xf32> to vector<1x16xf32>
    %196 = vector.broadcast %188 : f32 to vector<1x16xf32>
    %197 = arith.mulf %196, %195 : vector<1x16xf32>
    %198 = arith.addf %187, %197 : vector<1x16xf32>
    %c3_163 = arith.constant 3 : index
    %c3_164 = arith.constant 3 : index
    %199 = memref.load %arg6[%c3_163, %c3_164] : memref<8x4xf32, #tpu.memory_space<smem>>
    %c0_165 = arith.constant 0 : index
    %c3_166 = arith.constant 3 : index
    %c0_167 = arith.constant 0 : index
    %c0_168 = arith.constant 0 : index
    %200 = vector.load %arg2[%c0_165, %c3_166, %c0_167, %c0_168] : memref<1x4x8x16xf32, #tpu.memory_space<vmem>>, vector<1x1x8x16xf32>
    %201 = vector.shape_cast %200 : vector<1x1x8x16xf32> to vector<8x16xf32>
    %202 = vector.broadcast %199 : f32 to vector<8x16xf32>
    %203 = arith.mulf %202, %201 : vector<8x16xf32>
    %204 = arith.addf %193, %203 : vector<8x16xf32>
    %c0_169 = arith.constant 0 : index
    %c0_170 = arith.constant 0 : index
    %c3_171 = arith.constant 3 : index
    %c0_172 = arith.constant 0 : index
    %205 = vector.load %arg3[%c0_169, %c0_170, %c3_171, %c0_172] : memref<1x1x4x16xf32, #tpu.memory_space<vmem>>, vector<1x1x1x16xf32>
    %206 = vector.shape_cast %205 : vector<1x1x1x16xf32> to vector<1x16xf32>
    %207 = vector.broadcast %199 : f32 to vector<1x16xf32>
    %208 = arith.mulf %207, %206 : vector<1x16xf32>
    %209 = arith.addf %198, %208 : vector<1x16xf32>
    %c24 = arith.constant 24 : index
    %c0_173 = arith.constant 0 : index
    %210 = vector.load %arg9[%c24, %c0_173] : memref<72x16xf32, #tpu.memory_space<vmem>>, vector<8x16xf32>
    tpu.vector_store %arg9[%c24, %c0_173], %204 {strides = array<i32>} : memref<72x16xf32, #tpu.memory_space<vmem>>, vector<8x16xf32>,
    %211 = vector.extract_strided_slice %204 {offsets = [7, 0], sizes = [1, 16], strides = [1, 1]} : vector<8x16xf32> to vector<1x16xf32>
    %212 = arith.addf %211, %209 : vector<1x16xf32>
    %cst_174 = arith.constant 5.000000e-01 : f32
    %213 = vector.broadcast %cst_174 : f32 to vector<1x16xf32>
    %214 = arith.mulf %213, %212 : vector<1x16xf32>
    %c67 = arith.constant 67 : index
    %c0_175 = arith.constant 0 : index
    %215 = vector.load %arg9[%c67, %c0_175] : memref<72x16xf32, #tpu.memory_space<vmem>>, vector<1x16xf32>
    tpu.vector_store %arg9[%c67, %c0_175], %214 {strides = array<i32>} : memref<72x16xf32, #tpu.memory_space<vmem>>, vector<1x16xf32>,
    %c4 = arith.constant 4 : index
    %216 = memref.load %arg7[%c4] : memref<8xf32, #tpu.memory_space<smem>>
    %217 = vector.broadcast %216 : f32 to vector<8x16xf32>
    %c4_176 = arith.constant 4 : index
    %218 = memref.load %arg7[%c4_176] : memref<8xf32, #tpu.memory_space<smem>>
    %219 = vector.broadcast %218 : f32 to vector<1x16xf32>
    %c4_177 = arith.constant 4 : index
    %c0_178 = arith.constant 0 : index
    %220 = memref.load %arg6[%c4_177, %c0_178] : memref<8x4xf32, #tpu.memory_space<smem>>
    %c0_179 = arith.constant 0 : index
    %c0_180 = arith.constant 0 : index
    %c0_181 = arith.constant 0 : index
    %c0_182 = arith.constant 0 : index
    %221 = vector.load %arg2[%c0_179, %c0_180, %c0_181, %c0_182] : memref<1x4x8x16xf32, #tpu.memory_space<vmem>>, vector<1x1x8x16xf32>
    %222 = vector.shape_cast %221 : vector<1x1x8x16xf32> to vector<8x16xf32>
    %223 = vector.broadcast %220 : f32 to vector<8x16xf32>
    %224 = arith.mulf %223, %222 : vector<8x16xf32>
    %225 = arith.addf %217, %224 : vector<8x16xf32>
    %c0_183 = arith.constant 0 : index
    %c0_184 = arith.constant 0 : index
    %c0_185 = arith.constant 0 : index
    %c0_186 = arith.constant 0 : index
    %226 = vector.load %arg3[%c0_183, %c0_184, %c0_185, %c0_186] : memref<1x1x4x16xf32, #tpu.memory_space<vmem>>, vector<1x1x1x16xf32>
    %227 = vector.shape_cast %226 : vector<1x1x1x16xf32> to vector<1x16xf32>
    %228 = vector.broadcast %220 : f32 to vector<1x16xf32>
    %229 = arith.mulf %228, %227 : vector<1x16xf32>
    %230 = arith.addf %219, %229 : vector<1x16xf32>
    %c4_187 = arith.constant 4 : index
    %c1_188 = arith.constant 1 : index
    %231 = memref.load %arg6[%c4_187, %c1_188] : memref<8x4xf32, #tpu.memory_space<smem>>
    %c0_189 = arith.constant 0 : index
    %c1_190 = arith.constant 1 : index
    %c0_191 = arith.constant 0 : index
    %c0_192 = arith.constant 0 : index
    %232 = vector.load %arg2[%c0_189, %c1_190, %c0_191, %c0_192] : memref<1x4x8x16xf32, #tpu.memory_space<vmem>>, vector<1x1x8x16xf32>
    %233 = vector.shape_cast %232 : vector<1x1x8x16xf32> to vector<8x16xf32>
    %234 = vector.broadcast %231 : f32 to vector<8x16xf32>
    %235 = arith.mulf %234, %233 : vector<8x16xf32>
    %236 = arith.addf %225, %235 : vector<8x16xf32>
    %c0_193 = arith.constant 0 : index
    %c0_194 = arith.constant 0 : index
    %c1_195 = arith.constant 1 : index
    %c0_196 = arith.constant 0 : index
    %237 = vector.load %arg3[%c0_193, %c0_194, %c1_195, %c0_196] : memref<1x1x4x16xf32, #tpu.memory_space<vmem>>, vector<1x1x1x16xf32>
    %238 = vector.shape_cast %237 : vector<1x1x1x16xf32> to vector<1x16xf32>
    %239 = vector.broadcast %231 : f32 to vector<1x16xf32>
    %240 = arith.mulf %239, %238 : vector<1x16xf32>
    %241 = arith.addf %230, %240 : vector<1x16xf32>
    %c4_197 = arith.constant 4 : index
    %c2_198 = arith.constant 2 : index
    %242 = memref.load %arg6[%c4_197, %c2_198] : memref<8x4xf32, #tpu.memory_space<smem>>
    %c0_199 = arith.constant 0 : index
    %c2_200 = arith.constant 2 : index
    %c0_201 = arith.constant 0 : index
    %c0_202 = arith.constant 0 : index
    %243 = vector.load %arg2[%c0_199, %c2_200, %c0_201, %c0_202] : memref<1x4x8x16xf32, #tpu.memory_space<vmem>>, vector<1x1x8x16xf32>
    %244 = vector.shape_cast %243 : vector<1x1x8x16xf32> to vector<8x16xf32>
    %245 = vector.broadcast %242 : f32 to vector<8x16xf32>
    %246 = arith.mulf %245, %244 : vector<8x16xf32>
    %247 = arith.addf %236, %246 : vector<8x16xf32>
    %c0_203 = arith.constant 0 : index
    %c0_204 = arith.constant 0 : index
    %c2_205 = arith.constant 2 : index
    %c0_206 = arith.constant 0 : index
    %248 = vector.load %arg3[%c0_203, %c0_204, %c2_205, %c0_206] : memref<1x1x4x16xf32, #tpu.memory_space<vmem>>, vector<1x1x1x16xf32>
    %249 = vector.shape_cast %248 : vector<1x1x1x16xf32> to vector<1x16xf32>
    %250 = vector.broadcast %242 : f32 to vector<1x16xf32>
    %251 = arith.mulf %250, %249 : vector<1x16xf32>
    %252 = arith.addf %241, %251 : vector<1x16xf32>
    %c4_207 = arith.constant 4 : index
    %c3_208 = arith.constant 3 : index
    %253 = memref.load %arg6[%c4_207, %c3_208] : memref<8x4xf32, #tpu.memory_space<smem>>
    %c0_209 = arith.constant 0 : index
    %c3_210 = arith.constant 3 : index
    %c0_211 = arith.constant 0 : index
    %c0_212 = arith.constant 0 : index
    %254 = vector.load %arg2[%c0_209, %c3_210, %c0_211, %c0_212] : memref<1x4x8x16xf32, #tpu.memory_space<vmem>>, vector<1x1x8x16xf32>
    %255 = vector.shape_cast %254 : vector<1x1x8x16xf32> to vector<8x16xf32>
    %256 = vector.broadcast %253 : f32 to vector<8x16xf32>
    %257 = arith.mulf %256, %255 : vector<8x16xf32>
    %258 = arith.addf %247, %257 : vector<8x16xf32>
    %c0_213 = arith.constant 0 : index
    %c0_214 = arith.constant 0 : index
    %c3_215 = arith.constant 3 : index
    %c0_216 = arith.constant 0 : index
    %259 = vector.load %arg3[%c0_213, %c0_214, %c3_215, %c0_216] : memref<1x1x4x16xf32, #tpu.memory_space<vmem>>, vector<1x1x1x16xf32>
    %260 = vector.shape_cast %259 : vector<1x1x1x16xf32> to vector<1x16xf32>
    %261 = vector.broadcast %253 : f32 to vector<1x16xf32>
    %262 = arith.mulf %261, %260 : vector<1x16xf32>
    %263 = arith.addf %252, %262 : vector<1x16xf32>
    %c32 = arith.constant 32 : index
    %c0_217 = arith.constant 0 : index
    %264 = vector.load %arg9[%c32, %c0_217] : memref<72x16xf32, #tpu.memory_space<vmem>>, vector<8x16xf32>
    tpu.vector_store %arg9[%c32, %c0_217], %258 {strides = array<i32>} : memref<72x16xf32, #tpu.memory_space<vmem>>, vector<8x16xf32>,
    %265 = vector.extract_strided_slice %258 {offsets = [7, 0], sizes = [1, 16], strides = [1, 1]} : vector<8x16xf32> to vector<1x16xf32>
    %266 = arith.addf %265, %263 : vector<1x16xf32>
    %cst_218 = arith.constant 5.000000e-01 : f32
    %267 = vector.broadcast %cst_218 : f32 to vector<1x16xf32>
    %268 = arith.mulf %267, %266 : vector<1x16xf32>
    %c68 = arith.constant 68 : index
    %c0_219 = arith.constant 0 : index
    %269 = vector.load %arg9[%c68, %c0_219] : memref<72x16xf32, #tpu.memory_space<vmem>>, vector<1x16xf32>
    tpu.vector_store %arg9[%c68, %c0_219], %268 {strides = array<i32>} : memref<72x16xf32, #tpu.memory_space<vmem>>, vector<1x16xf32>,
    %c5 = arith.constant 5 : index
    %270 = memref.load %arg7[%c5] : memref<8xf32, #tpu.memory_space<smem>>
    %271 = vector.broadcast %270 : f32 to vector<8x16xf32>
    %c5_220 = arith.constant 5 : index
    %272 = memref.load %arg7[%c5_220] : memref<8xf32, #tpu.memory_space<smem>>
    %273 = vector.broadcast %272 : f32 to vector<1x16xf32>
    %c5_221 = arith.constant 5 : index
    %c0_222 = arith.constant 0 : index
    %274 = memref.load %arg6[%c5_221, %c0_222] : memref<8x4xf32, #tpu.memory_space<smem>>
    %c0_223 = arith.constant 0 : index
    %c0_224 = arith.constant 0 : index
    %c0_225 = arith.constant 0 : index
    %c0_226 = arith.constant 0 : index
    %275 = vector.load %arg2[%c0_223, %c0_224, %c0_225, %c0_226] : memref<1x4x8x16xf32, #tpu.memory_space<vmem>>, vector<1x1x8x16xf32>
    %276 = vector.shape_cast %275 : vector<1x1x8x16xf32> to vector<8x16xf32>
    %277 = vector.broadcast %274 : f32 to vector<8x16xf32>
    %278 = arith.mulf %277, %276 : vector<8x16xf32>
    %279 = arith.addf %271, %278 : vector<8x16xf32>
    %c0_227 = arith.constant 0 : index
    %c0_228 = arith.constant 0 : index
    %c0_229 = arith.constant 0 : index
    %c0_230 = arith.constant 0 : index
    %280 = vector.load %arg3[%c0_227, %c0_228, %c0_229, %c0_230] : memref<1x1x4x16xf32, #tpu.memory_space<vmem>>, vector<1x1x1x16xf32>
    %281 = vector.shape_cast %280 : vector<1x1x1x16xf32> to vector<1x16xf32>
    %282 = vector.broadcast %274 : f32 to vector<1x16xf32>
    %283 = arith.mulf %282, %281 : vector<1x16xf32>
    %284 = arith.addf %273, %283 : vector<1x16xf32>
    %c5_231 = arith.constant 5 : index
    %c1_232 = arith.constant 1 : index
    %285 = memref.load %arg6[%c5_231, %c1_232] : memref<8x4xf32, #tpu.memory_space<smem>>
    %c0_233 = arith.constant 0 : index
    %c1_234 = arith.constant 1 : index
    %c0_235 = arith.constant 0 : index
    %c0_236 = arith.constant 0 : index
    %286 = vector.load %arg2[%c0_233, %c1_234, %c0_235, %c0_236] : memref<1x4x8x16xf32, #tpu.memory_space<vmem>>, vector<1x1x8x16xf32>
    %287 = vector.shape_cast %286 : vector<1x1x8x16xf32> to vector<8x16xf32>
    %288 = vector.broadcast %285 : f32 to vector<8x16xf32>
    %289 = arith.mulf %288, %287 : vector<8x16xf32>
    %290 = arith.addf %279, %289 : vector<8x16xf32>
    %c0_237 = arith.constant 0 : index
    %c0_238 = arith.constant 0 : index
    %c1_239 = arith.constant 1 : index
    %c0_240 = arith.constant 0 : index
    %291 = vector.load %arg3[%c0_237, %c0_238, %c1_239, %c0_240] : memref<1x1x4x16xf32, #tpu.memory_space<vmem>>, vector<1x1x1x16xf32>
    %292 = vector.shape_cast %291 : vector<1x1x1x16xf32> to vector<1x16xf32>
    %293 = vector.broadcast %285 : f32 to vector<1x16xf32>
    %294 = arith.mulf %293, %292 : vector<1x16xf32>
    %295 = arith.addf %284, %294 : vector<1x16xf32>
    %c5_241 = arith.constant 5 : index
    %c2_242 = arith.constant 2 : index
    %296 = memref.load %arg6[%c5_241, %c2_242] : memref<8x4xf32, #tpu.memory_space<smem>>
    %c0_243 = arith.constant 0 : index
    %c2_244 = arith.constant 2 : index
    %c0_245 = arith.constant 0 : index
    %c0_246 = arith.constant 0 : index
    %297 = vector.load %arg2[%c0_243, %c2_244, %c0_245, %c0_246] : memref<1x4x8x16xf32, #tpu.memory_space<vmem>>, vector<1x1x8x16xf32>
    %298 = vector.shape_cast %297 : vector<1x1x8x16xf32> to vector<8x16xf32>
    %299 = vector.broadcast %296 : f32 to vector<8x16xf32>
    %300 = arith.mulf %299, %298 : vector<8x16xf32>
    %301 = arith.addf %290, %300 : vector<8x16xf32>
    %c0_247 = arith.constant 0 : index
    %c0_248 = arith.constant 0 : index
    %c2_249 = arith.constant 2 : index
    %c0_250 = arith.constant 0 : index
    %302 = vector.load %arg3[%c0_247, %c0_248, %c2_249, %c0_250] : memref<1x1x4x16xf32, #tpu.memory_space<vmem>>, vector<1x1x1x16xf32>
    %303 = vector.shape_cast %302 : vector<1x1x1x16xf32> to vector<1x16xf32>
    %304 = vector.broadcast %296 : f32 to vector<1x16xf32>
    %305 = arith.mulf %304, %303 : vector<1x16xf32>
    %306 = arith.addf %295, %305 : vector<1x16xf32>
    %c5_251 = arith.constant 5 : index
    %c3_252 = arith.constant 3 : index
    %307 = memref.load %arg6[%c5_251, %c3_252] : memref<8x4xf32, #tpu.memory_space<smem>>
    %c0_253 = arith.constant 0 : index
    %c3_254 = arith.constant 3 : index
    %c0_255 = arith.constant 0 : index
    %c0_256 = arith.constant 0 : index
    %308 = vector.load %arg2[%c0_253, %c3_254, %c0_255, %c0_256] : memref<1x4x8x16xf32, #tpu.memory_space<vmem>>, vector<1x1x8x16xf32>
    %309 = vector.shape_cast %308 : vector<1x1x8x16xf32> to vector<8x16xf32>
    %310 = vector.broadcast %307 : f32 to vector<8x16xf32>
    %311 = arith.mulf %310, %309 : vector<8x16xf32>
    %312 = arith.addf %301, %311 : vector<8x16xf32>
    %c0_257 = arith.constant 0 : index
    %c0_258 = arith.constant 0 : index
    %c3_259 = arith.constant 3 : index
    %c0_260 = arith.constant 0 : index
    %313 = vector.load %arg3[%c0_257, %c0_258, %c3_259, %c0_260] : memref<1x1x4x16xf32, #tpu.memory_space<vmem>>, vector<1x1x1x16xf32>
    %314 = vector.shape_cast %313 : vector<1x1x1x16xf32> to vector<1x16xf32>
    %315 = vector.broadcast %307 : f32 to vector<1x16xf32>
    %316 = arith.mulf %315, %314 : vector<1x16xf32>
    %317 = arith.addf %306, %316 : vector<1x16xf32>
    %c40 = arith.constant 40 : index
    %c0_261 = arith.constant 0 : index
    %318 = vector.load %arg9[%c40, %c0_261] : memref<72x16xf32, #tpu.memory_space<vmem>>, vector<8x16xf32>
    tpu.vector_store %arg9[%c40, %c0_261], %312 {strides = array<i32>} : memref<72x16xf32, #tpu.memory_space<vmem>>, vector<8x16xf32>,
    %319 = vector.extract_strided_slice %312 {offsets = [7, 0], sizes = [1, 16], strides = [1, 1]} : vector<8x16xf32> to vector<1x16xf32>
    %320 = arith.addf %319, %317 : vector<1x16xf32>
    %cst_262 = arith.constant 5.000000e-01 : f32
    %321 = vector.broadcast %cst_262 : f32 to vector<1x16xf32>
    %322 = arith.mulf %321, %320 : vector<1x16xf32>
    %c69 = arith.constant 69 : index
    %c0_263 = arith.constant 0 : index
    %323 = vector.load %arg9[%c69, %c0_263] : memref<72x16xf32, #tpu.memory_space<vmem>>, vector<1x16xf32>
    tpu.vector_store %arg9[%c69, %c0_263], %322 {strides = array<i32>} : memref<72x16xf32, #tpu.memory_space<vmem>>, vector<1x16xf32>,
    %c6 = arith.constant 6 : index
    %324 = memref.load %arg7[%c6] : memref<8xf32, #tpu.memory_space<smem>>
    %325 = vector.broadcast %324 : f32 to vector<8x16xf32>
    %c6_264 = arith.constant 6 : index
    %326 = memref.load %arg7[%c6_264] : memref<8xf32, #tpu.memory_space<smem>>
    %327 = vector.broadcast %326 : f32 to vector<1x16xf32>
    %c6_265 = arith.constant 6 : index
    %c0_266 = arith.constant 0 : index
    %328 = memref.load %arg6[%c6_265, %c0_266] : memref<8x4xf32, #tpu.memory_space<smem>>
    %c0_267 = arith.constant 0 : index
    %c0_268 = arith.constant 0 : index
    %c0_269 = arith.constant 0 : index
    %c0_270 = arith.constant 0 : index
    %329 = vector.load %arg2[%c0_267, %c0_268, %c0_269, %c0_270] : memref<1x4x8x16xf32, #tpu.memory_space<vmem>>, vector<1x1x8x16xf32>
    %330 = vector.shape_cast %329 : vector<1x1x8x16xf32> to vector<8x16xf32>
    %331 = vector.broadcast %328 : f32 to vector<8x16xf32>
    %332 = arith.mulf %331, %330 : vector<8x16xf32>
    %333 = arith.addf %325, %332 : vector<8x16xf32>
    %c0_271 = arith.constant 0 : index
    %c0_272 = arith.constant 0 : index
    %c0_273 = arith.constant 0 : index
    %c0_274 = arith.constant 0 : index
    %334 = vector.load %arg3[%c0_271, %c0_272, %c0_273, %c0_274] : memref<1x1x4x16xf32, #tpu.memory_space<vmem>>, vector<1x1x1x16xf32>
    %335 = vector.shape_cast %334 : vector<1x1x1x16xf32> to vector<1x16xf32>
    %336 = vector.broadcast %328 : f32 to vector<1x16xf32>
    %337 = arith.mulf %336, %335 : vector<1x16xf32>
    %338 = arith.addf %327, %337 : vector<1x16xf32>
    %c6_275 = arith.constant 6 : index
    %c1_276 = arith.constant 1 : index
    %339 = memref.load %arg6[%c6_275, %c1_276] : memref<8x4xf32, #tpu.memory_space<smem>>
    %c0_277 = arith.constant 0 : index
    %c1_278 = arith.constant 1 : index
    %c0_279 = arith.constant 0 : index
    %c0_280 = arith.constant 0 : index
    %340 = vector.load %arg2[%c0_277, %c1_278, %c0_279, %c0_280] : memref<1x4x8x16xf32, #tpu.memory_space<vmem>>, vector<1x1x8x16xf32>
    %341 = vector.shape_cast %340 : vector<1x1x8x16xf32> to vector<8x16xf32>
    %342 = vector.broadcast %339 : f32 to vector<8x16xf32>
    %343 = arith.mulf %342, %341 : vector<8x16xf32>
    %344 = arith.addf %333, %343 : vector<8x16xf32>
    %c0_281 = arith.constant 0 : index
    %c0_282 = arith.constant 0 : index
    %c1_283 = arith.constant 1 : index
    %c0_284 = arith.constant 0 : index
    %345 = vector.load %arg3[%c0_281, %c0_282, %c1_283, %c0_284] : memref<1x1x4x16xf32, #tpu.memory_space<vmem>>, vector<1x1x1x16xf32>
    %346 = vector.shape_cast %345 : vector<1x1x1x16xf32> to vector<1x16xf32>
    %347 = vector.broadcast %339 : f32 to vector<1x16xf32>
    %348 = arith.mulf %347, %346 : vector<1x16xf32>
    %349 = arith.addf %338, %348 : vector<1x16xf32>
    %c6_285 = arith.constant 6 : index
    %c2_286 = arith.constant 2 : index
    %350 = memref.load %arg6[%c6_285, %c2_286] : memref<8x4xf32, #tpu.memory_space<smem>>
    %c0_287 = arith.constant 0 : index
    %c2_288 = arith.constant 2 : index
    %c0_289 = arith.constant 0 : index
    %c0_290 = arith.constant 0 : index
    %351 = vector.load %arg2[%c0_287, %c2_288, %c0_289, %c0_290] : memref<1x4x8x16xf32, #tpu.memory_space<vmem>>, vector<1x1x8x16xf32>
    %352 = vector.shape_cast %351 : vector<1x1x8x16xf32> to vector<8x16xf32>
    %353 = vector.broadcast %350 : f32 to vector<8x16xf32>
    %354 = arith.mulf %353, %352 : vector<8x16xf32>
    %355 = arith.addf %344, %354 : vector<8x16xf32>
    %c0_291 = arith.constant 0 : index
    %c0_292 = arith.constant 0 : index
    %c2_293 = arith.constant 2 : index
    %c0_294 = arith.constant 0 : index
    %356 = vector.load %arg3[%c0_291, %c0_292, %c2_293, %c0_294] : memref<1x1x4x16xf32, #tpu.memory_space<vmem>>, vector<1x1x1x16xf32>
    %357 = vector.shape_cast %356 : vector<1x1x1x16xf32> to vector<1x16xf32>
    %358 = vector.broadcast %350 : f32 to vector<1x16xf32>
    %359 = arith.mulf %358, %357 : vector<1x16xf32>
    %360 = arith.addf %349, %359 : vector<1x16xf32>
    %c6_295 = arith.constant 6 : index
    %c3_296 = arith.constant 3 : index
    %361 = memref.load %arg6[%c6_295, %c3_296] : memref<8x4xf32, #tpu.memory_space<smem>>
    %c0_297 = arith.constant 0 : index
    %c3_298 = arith.constant 3 : index
    %c0_299 = arith.constant 0 : index
    %c0_300 = arith.constant 0 : index
    %362 = vector.load %arg2[%c0_297, %c3_298, %c0_299, %c0_300] : memref<1x4x8x16xf32, #tpu.memory_space<vmem>>, vector<1x1x8x16xf32>
    %363 = vector.shape_cast %362 : vector<1x1x8x16xf32> to vector<8x16xf32>
    %364 = vector.broadcast %361 : f32 to vector<8x16xf32>
    %365 = arith.mulf %364, %363 : vector<8x16xf32>
    %366 = arith.addf %355, %365 : vector<8x16xf32>
    %c0_301 = arith.constant 0 : index
    %c0_302 = arith.constant 0 : index
    %c3_303 = arith.constant 3 : index
    %c0_304 = arith.constant 0 : index
    %367 = vector.load %arg3[%c0_301, %c0_302, %c3_303, %c0_304] : memref<1x1x4x16xf32, #tpu.memory_space<vmem>>, vector<1x1x1x16xf32>
    %368 = vector.shape_cast %367 : vector<1x1x1x16xf32> to vector<1x16xf32>
    %369 = vector.broadcast %361 : f32 to vector<1x16xf32>
    %370 = arith.mulf %369, %368 : vector<1x16xf32>
    %371 = arith.addf %360, %370 : vector<1x16xf32>
    %c48 = arith.constant 48 : index
    %c0_305 = arith.constant 0 : index
    %372 = vector.load %arg9[%c48, %c0_305] : memref<72x16xf32, #tpu.memory_space<vmem>>, vector<8x16xf32>
    tpu.vector_store %arg9[%c48, %c0_305], %366 {strides = array<i32>} : memref<72x16xf32, #tpu.memory_space<vmem>>, vector<8x16xf32>,
    %373 = vector.extract_strided_slice %366 {offsets = [7, 0], sizes = [1, 16], strides = [1, 1]} : vector<8x16xf32> to vector<1x16xf32>
    %374 = arith.addf %373, %371 : vector<1x16xf32>
    %cst_306 = arith.constant 5.000000e-01 : f32
    %375 = vector.broadcast %cst_306 : f32 to vector<1x16xf32>
    %376 = arith.mulf %375, %374 : vector<1x16xf32>
    %c70 = arith.constant 70 : index
    %c0_307 = arith.constant 0 : index
    %377 = vector.load %arg9[%c70, %c0_307] : memref<72x16xf32, #tpu.memory_space<vmem>>, vector<1x16xf32>
    tpu.vector_store %arg9[%c70, %c0_307], %376 {strides = array<i32>} : memref<72x16xf32, #tpu.memory_space<vmem>>, vector<1x16xf32>,
    %c7 = arith.constant 7 : index
    %378 = memref.load %arg7[%c7] : memref<8xf32, #tpu.memory_space<smem>>
    %379 = vector.broadcast %378 : f32 to vector<8x16xf32>
    %c7_308 = arith.constant 7 : index
    %380 = memref.load %arg7[%c7_308] : memref<8xf32, #tpu.memory_space<smem>>
    %381 = vector.broadcast %380 : f32 to vector<1x16xf32>
    %c7_309 = arith.constant 7 : index
    %c0_310 = arith.constant 0 : index
    %382 = memref.load %arg6[%c7_309, %c0_310] : memref<8x4xf32, #tpu.memory_space<smem>>
    %c0_311 = arith.constant 0 : index
    %c0_312 = arith.constant 0 : index
    %c0_313 = arith.constant 0 : index
    %c0_314 = arith.constant 0 : index
    %383 = vector.load %arg2[%c0_311, %c0_312, %c0_313, %c0_314] : memref<1x4x8x16xf32, #tpu.memory_space<vmem>>, vector<1x1x8x16xf32>
    %384 = vector.shape_cast %383 : vector<1x1x8x16xf32> to vector<8x16xf32>
    %385 = vector.broadcast %382 : f32 to vector<8x16xf32>
    %386 = arith.mulf %385, %384 : vector<8x16xf32>
    %387 = arith.addf %379, %386 : vector<8x16xf32>
    %c0_315 = arith.constant 0 : index
    %c0_316 = arith.constant 0 : index
    %c0_317 = arith.constant 0 : index
    %c0_318 = arith.constant 0 : index
    %388 = vector.load %arg3[%c0_315, %c0_316, %c0_317, %c0_318] : memref<1x1x4x16xf32, #tpu.memory_space<vmem>>, vector<1x1x1x16xf32>
    %389 = vector.shape_cast %388 : vector<1x1x1x16xf32> to vector<1x16xf32>
    %390 = vector.broadcast %382 : f32 to vector<1x16xf32>
    %391 = arith.mulf %390, %389 : vector<1x16xf32>
    %392 = arith.addf %381, %391 : vector<1x16xf32>
    %c7_319 = arith.constant 7 : index
    %c1_320 = arith.constant 1 : index
    %393 = memref.load %arg6[%c7_319, %c1_320] : memref<8x4xf32, #tpu.memory_space<smem>>
    %c0_321 = arith.constant 0 : index
    %c1_322 = arith.constant 1 : index
    %c0_323 = arith.constant 0 : index
    %c0_324 = arith.constant 0 : index
    %394 = vector.load %arg2[%c0_321, %c1_322, %c0_323, %c0_324] : memref<1x4x8x16xf32, #tpu.memory_space<vmem>>, vector<1x1x8x16xf32>
    %395 = vector.shape_cast %394 : vector<1x1x8x16xf32> to vector<8x16xf32>
    %396 = vector.broadcast %393 : f32 to vector<8x16xf32>
    %397 = arith.mulf %396, %395 : vector<8x16xf32>
    %398 = arith.addf %387, %397 : vector<8x16xf32>
    %c0_325 = arith.constant 0 : index
    %c0_326 = arith.constant 0 : index
    %c1_327 = arith.constant 1 : index
    %c0_328 = arith.constant 0 : index
    %399 = vector.load %arg3[%c0_325, %c0_326, %c1_327, %c0_328] : memref<1x1x4x16xf32, #tpu.memory_space<vmem>>, vector<1x1x1x16xf32>
    %400 = vector.shape_cast %399 : vector<1x1x1x16xf32> to vector<1x16xf32>
    %401 = vector.broadcast %393 : f32 to vector<1x16xf32>
    %402 = arith.mulf %401, %400 : vector<1x16xf32>
    %403 = arith.addf %392, %402 : vector<1x16xf32>
    %c7_329 = arith.constant 7 : index
    %c2_330 = arith.constant 2 : index
    %404 = memref.load %arg6[%c7_329, %c2_330] : memref<8x4xf32, #tpu.memory_space<smem>>
    %c0_331 = arith.constant 0 : index
    %c2_332 = arith.constant 2 : index
    %c0_333 = arith.constant 0 : index
    %c0_334 = arith.constant 0 : index
    %405 = vector.load %arg2[%c0_331, %c2_332, %c0_333, %c0_334] : memref<1x4x8x16xf32, #tpu.memory_space<vmem>>, vector<1x1x8x16xf32>
    %406 = vector.shape_cast %405 : vector<1x1x8x16xf32> to vector<8x16xf32>
    %407 = vector.broadcast %404 : f32 to vector<8x16xf32>
    %408 = arith.mulf %407, %406 : vector<8x16xf32>
    %409 = arith.addf %398, %408 : vector<8x16xf32>
    %c0_335 = arith.constant 0 : index
    %c0_336 = arith.constant 0 : index
    %c2_337 = arith.constant 2 : index
    %c0_338 = arith.constant 0 : index
    %410 = vector.load %arg3[%c0_335, %c0_336, %c2_337, %c0_338] : memref<1x1x4x16xf32, #tpu.memory_space<vmem>>, vector<1x1x1x16xf32>
    %411 = vector.shape_cast %410 : vector<1x1x1x16xf32> to vector<1x16xf32>
    %412 = vector.broadcast %404 : f32 to vector<1x16xf32>
    %413 = arith.mulf %412, %411 : vector<1x16xf32>
    %414 = arith.addf %403, %413 : vector<1x16xf32>
    %c7_339 = arith.constant 7 : index
    %c3_340 = arith.constant 3 : index
    %415 = memref.load %arg6[%c7_339, %c3_340] : memref<8x4xf32, #tpu.memory_space<smem>>
    %c0_341 = arith.constant 0 : index
    %c3_342 = arith.constant 3 : index
    %c0_343 = arith.constant 0 : index
    %c0_344 = arith.constant 0 : index
    %416 = vector.load %arg2[%c0_341, %c3_342, %c0_343, %c0_344] : memref<1x4x8x16xf32, #tpu.memory_space<vmem>>, vector<1x1x8x16xf32>
    %417 = vector.shape_cast %416 : vector<1x1x8x16xf32> to vector<8x16xf32>
    %418 = vector.broadcast %415 : f32 to vector<8x16xf32>
    %419 = arith.mulf %418, %417 : vector<8x16xf32>
    %420 = arith.addf %409, %419 : vector<8x16xf32>
    %c0_345 = arith.constant 0 : index
    %c0_346 = arith.constant 0 : index
    %c3_347 = arith.constant 3 : index
    %c0_348 = arith.constant 0 : index
    %421 = vector.load %arg3[%c0_345, %c0_346, %c3_347, %c0_348] : memref<1x1x4x16xf32, #tpu.memory_space<vmem>>, vector<1x1x1x16xf32>
    %422 = vector.shape_cast %421 : vector<1x1x1x16xf32> to vector<1x16xf32>
    %423 = vector.broadcast %415 : f32 to vector<1x16xf32>
    %424 = arith.mulf %423, %422 : vector<1x16xf32>
    %425 = arith.addf %414, %424 : vector<1x16xf32>
    %c56 = arith.constant 56 : index
    %c0_349 = arith.constant 0 : index
    %426 = vector.load %arg9[%c56, %c0_349] : memref<72x16xf32, #tpu.memory_space<vmem>>, vector<8x16xf32>
    tpu.vector_store %arg9[%c56, %c0_349], %420 {strides = array<i32>} : memref<72x16xf32, #tpu.memory_space<vmem>>, vector<8x16xf32>,
    %427 = vector.extract_strided_slice %420 {offsets = [7, 0], sizes = [1, 16], strides = [1, 1]} : vector<8x16xf32> to vector<1x16xf32>
    %428 = arith.addf %427, %425 : vector<1x16xf32>
    %cst_350 = arith.constant 5.000000e-01 : f32
    %429 = vector.broadcast %cst_350 : f32 to vector<1x16xf32>
    %430 = arith.mulf %429, %428 : vector<1x16xf32>
    %c71 = arith.constant 71 : index
    %c0_351 = arith.constant 0 : index
    %431 = vector.load %arg9[%c71, %c0_351] : memref<72x16xf32, #tpu.memory_space<vmem>>, vector<1x16xf32>
    tpu.vector_store %arg9[%c71, %c0_351], %430 {strides = array<i32>} : memref<72x16xf32, #tpu.memory_space<vmem>>, vector<1x16xf32>,
    %c0_352 = arith.constant 0 : index
    %c0_353 = arith.constant 0 : index
    %432 = vector.load %arg9[%c0_352, %c0_353] : memref<72x16xf32, #tpu.memory_space<vmem>>, vector<72x16xf32>
    %c0_354 = arith.constant 0 : index
    %c0_355 = arith.constant 0 : index
    %433 = vector.load %arg4[%c0_354, %c0_355] : memref<16x31xf32, #tpu.memory_space<vmem>>, vector<16x31xf32>
    %cst_356 = arith.constant dense<0.000000e+00> : vector<72x31xf32>
    %434 = tpu.matmul %432, %433, %cst_356 {dimension_numbers = #tpu.dot_dimension_numbers<[1], [0], [0], [1], [0, 0, 1, 1], [], []>} : vector<72x16xf32>, vector<16x31xf32>, vector<72x31xf32> -> vector<72x31xf32>
    %c0_357 = arith.constant 0 : index
    %c0_358 = arith.constant 0 : index
    %435 = vector.load %arg10[%c0_357, %c0_358] : memref<72x31xf32, #tpu.memory_space<vmem>>, vector<72x31xf32>
    tpu.vector_store %arg10[%c0_357, %c0_358], %434 {strides = array<i32>} : memref<72x31xf32, #tpu.memory_space<vmem>>, vector<72x31xf32>,
    %c0_359 = arith.constant 0 : index
    %c0_360 = arith.constant 0 : index
    %436 = vector.load %arg5[%c0_359, %c0_360] : memref<16x8xf32, #tpu.memory_space<vmem>>, vector<16x8xf32>
    %c0_361 = arith.constant 0 : index
    %c0_362 = arith.constant 0 : index
    %437 = vector.load %arg10[%c0_361, %c0_362] : memref<72x31xf32, #tpu.memory_space<vmem>>, vector<8x31xf32>
    %cst_363 = arith.constant dense<0.000000e+00> : vector<16x31xf32>
    %438 = tpu.matmul %436, %437, %cst_363 {dimension_numbers = #tpu.dot_dimension_numbers<[1], [0], [0], [1], [0, 0, 1, 1], [], []>} : vector<16x8xf32>, vector<8x31xf32>, vector<16x31xf32> -> vector<16x31xf32>
    %c0_364 = arith.constant 0 : index
    %c0_365 = arith.constant 0 : index
    %c0_366 = arith.constant 0 : index
    %c0_367 = arith.constant 0 : index
    %439 = vector.load %arg8[%c0_364, %c0_365, %c0_366, %c0_367] : memref<1x8x16x31xf32, #tpu.memory_space<vmem>>, vector<1x1x16x31xf32>
    %440 = vector.shape_cast %439 : vector<1x1x16x31xf32> to vector<16x31xf32>
    %441 = vector.shape_cast %438 : vector<16x31xf32> to vector<1x1x16x31xf32>
    tpu.vector_store %arg8[%c0_364, %c0_365, %c0_366, %c0_367], %441 {strides = array<i32>} : memref<1x8x16x31xf32, #tpu.memory_space<vmem>>, vector<1x1x16x31xf32>,
    %c64_368 = arith.constant 64 : index
    %c0_369 = arith.constant 0 : index
    %442 = vector.load %arg10[%c64_368, %c0_369] : memref<72x31xf32, #tpu.memory_space<vmem>>, vector<1x31xf32>
    %c0_370 = arith.constant 0 : index
    %c0_371 = arith.constant 0 : index
    %c15 = arith.constant 15 : index
    %c0_372 = arith.constant 0 : index
    %443 = vector.load %arg8[%c0_370, %c0_371, %c15, %c0_372] : memref<1x8x16x31xf32, #tpu.memory_space<vmem>>, vector<1x1x1x31xf32>
    %444 = vector.shape_cast %443 : vector<1x1x1x31xf32> to vector<1x31xf32>
    %445 = vector.shape_cast %442 : vector<1x31xf32> to vector<1x1x1x31xf32>
    tpu.vector_store %arg8[%c0_370, %c0_371, %c15, %c0_372], %445 {strides = array<i32>} : memref<1x8x16x31xf32, #tpu.memory_space<vmem>>, vector<1x1x1x31xf32>,
    %c8_373 = arith.constant 8 : index
    %c0_374 = arith.constant 0 : index
    %446 = vector.load %arg10[%c8_373, %c0_374] : memref<72x31xf32, #tpu.memory_space<vmem>>, vector<8x31xf32>
    %cst_375 = arith.constant dense<0.000000e+00> : vector<16x31xf32>
    %447 = tpu.matmul %436, %446, %cst_375 {dimension_numbers = #tpu.dot_dimension_numbers<[1], [0], [0], [1], [0, 0, 1, 1], [], []>} : vector<16x8xf32>, vector<8x31xf32>, vector<16x31xf32> -> vector<16x31xf32>
    %c0_376 = arith.constant 0 : index
    %c1_377 = arith.constant 1 : index
    %c0_378 = arith.constant 0 : index
    %c0_379 = arith.constant 0 : index
    %448 = vector.load %arg8[%c0_376, %c1_377, %c0_378, %c0_379] : memref<1x8x16x31xf32, #tpu.memory_space<vmem>>, vector<1x1x16x31xf32>
    %449 = vector.shape_cast %448 : vector<1x1x16x31xf32> to vector<16x31xf32>
    %450 = vector.shape_cast %447 : vector<16x31xf32> to vector<1x1x16x31xf32>
    tpu.vector_store %arg8[%c0_376, %c1_377, %c0_378, %c0_379], %450 {strides = array<i32>} : memref<1x8x16x31xf32, #tpu.memory_space<vmem>>, vector<1x1x16x31xf32>,
    %c65_380 = arith.constant 65 : index
    %c0_381 = arith.constant 0 : index
    %451 = vector.load %arg10[%c65_380, %c0_381] : memref<72x31xf32, #tpu.memory_space<vmem>>, vector<1x31xf32>
    %c0_382 = arith.constant 0 : index
    %c1_383 = arith.constant 1 : index
    %c15_384 = arith.constant 15 : index
    %c0_385 = arith.constant 0 : index
    %452 = vector.load %arg8[%c0_382, %c1_383, %c15_384, %c0_385] : memref<1x8x16x31xf32, #tpu.memory_space<vmem>>, vector<1x1x1x31xf32>
    %453 = vector.shape_cast %452 : vector<1x1x1x31xf32> to vector<1x31xf32>
    %454 = vector.shape_cast %451 : vector<1x31xf32> to vector<1x1x1x31xf32>
    tpu.vector_store %arg8[%c0_382, %c1_383, %c15_384, %c0_385], %454 {strides = array<i32>} : memref<1x8x16x31xf32, #tpu.memory_space<vmem>>, vector<1x1x1x31xf32>,
    %c16_386 = arith.constant 16 : index
    %c0_387 = arith.constant 0 : index
    %455 = vector.load %arg10[%c16_386, %c0_387] : memref<72x31xf32, #tpu.memory_space<vmem>>, vector<8x31xf32>
    %cst_388 = arith.constant dense<0.000000e+00> : vector<16x31xf32>
    %456 = tpu.matmul %436, %455, %cst_388 {dimension_numbers = #tpu.dot_dimension_numbers<[1], [0], [0], [1], [0, 0, 1, 1], [], []>} : vector<16x8xf32>, vector<8x31xf32>, vector<16x31xf32> -> vector<16x31xf32>
    %c0_389 = arith.constant 0 : index
    %c2_390 = arith.constant 2 : index
    %c0_391 = arith.constant 0 : index
    %c0_392 = arith.constant 0 : index
    %457 = vector.load %arg8[%c0_389, %c2_390, %c0_391, %c0_392] : memref<1x8x16x31xf32, #tpu.memory_space<vmem>>, vector<1x1x16x31xf32>
    %458 = vector.shape_cast %457 : vector<1x1x16x31xf32> to vector<16x31xf32>
    %459 = vector.shape_cast %456 : vector<16x31xf32> to vector<1x1x16x31xf32>
    tpu.vector_store %arg8[%c0_389, %c2_390, %c0_391, %c0_392], %459 {strides = array<i32>} : memref<1x8x16x31xf32, #tpu.memory_space<vmem>>, vector<1x1x16x31xf32>,
    %c66_393 = arith.constant 66 : index
    %c0_394 = arith.constant 0 : index
    %460 = vector.load %arg10[%c66_393, %c0_394] : memref<72x31xf32, #tpu.memory_space<vmem>>, vector<1x31xf32>
    %c0_395 = arith.constant 0 : index
    %c2_396 = arith.constant 2 : index
    %c15_397 = arith.constant 15 : index
    %c0_398 = arith.constant 0 : index
    %461 = vector.load %arg8[%c0_395, %c2_396, %c15_397, %c0_398] : memref<1x8x16x31xf32, #tpu.memory_space<vmem>>, vector<1x1x1x31xf32>
    %462 = vector.shape_cast %461 : vector<1x1x1x31xf32> to vector<1x31xf32>
    %463 = vector.shape_cast %460 : vector<1x31xf32> to vector<1x1x1x31xf32>
    tpu.vector_store %arg8[%c0_395, %c2_396, %c15_397, %c0_398], %463 {strides = array<i32>} : memref<1x8x16x31xf32, #tpu.memory_space<vmem>>, vector<1x1x1x31xf32>,
    %c24_399 = arith.constant 24 : index
    %c0_400 = arith.constant 0 : index
    %464 = vector.load %arg10[%c24_399, %c0_400] : memref<72x31xf32, #tpu.memory_space<vmem>>, vector<8x31xf32>
    %cst_401 = arith.constant dense<0.000000e+00> : vector<16x31xf32>
    %465 = tpu.matmul %436, %464, %cst_401 {dimension_numbers = #tpu.dot_dimension_numbers<[1], [0], [0], [1], [0, 0, 1, 1], [], []>} : vector<16x8xf32>, vector<8x31xf32>, vector<16x31xf32> -> vector<16x31xf32>
    %c0_402 = arith.constant 0 : index
    %c3_403 = arith.constant 3 : index
    %c0_404 = arith.constant 0 : index
    %c0_405 = arith.constant 0 : index
    %466 = vector.load %arg8[%c0_402, %c3_403, %c0_404, %c0_405] : memref<1x8x16x31xf32, #tpu.memory_space<vmem>>, vector<1x1x16x31xf32>
    %467 = vector.shape_cast %466 : vector<1x1x16x31xf32> to vector<16x31xf32>
    %468 = vector.shape_cast %465 : vector<16x31xf32> to vector<1x1x16x31xf32>
    tpu.vector_store %arg8[%c0_402, %c3_403, %c0_404, %c0_405], %468 {strides = array<i32>} : memref<1x8x16x31xf32, #tpu.memory_space<vmem>>, vector<1x1x16x31xf32>,
    %c67_406 = arith.constant 67 : index
    %c0_407 = arith.constant 0 : index
    %469 = vector.load %arg10[%c67_406, %c0_407] : memref<72x31xf32, #tpu.memory_space<vmem>>, vector<1x31xf32>
    %c0_408 = arith.constant 0 : index
    %c3_409 = arith.constant 3 : index
    %c15_410 = arith.constant 15 : index
    %c0_411 = arith.constant 0 : index
    %470 = vector.load %arg8[%c0_408, %c3_409, %c15_410, %c0_411] : memref<1x8x16x31xf32, #tpu.memory_space<vmem>>, vector<1x1x1x31xf32>
    %471 = vector.shape_cast %470 : vector<1x1x1x31xf32> to vector<1x31xf32>
    %472 = vector.shape_cast %469 : vector<1x31xf32> to vector<1x1x1x31xf32>
    tpu.vector_store %arg8[%c0_408, %c3_409, %c15_410, %c0_411], %472 {strides = array<i32>} : memref<1x8x16x31xf32, #tpu.memory_space<vmem>>, vector<1x1x1x31xf32>,
    %c32_412 = arith.constant 32 : index
    %c0_413 = arith.constant 0 : index
    %473 = vector.load %arg10[%c32_412, %c0_413] : memref<72x31xf32, #tpu.memory_space<vmem>>, vector<8x31xf32>
    %cst_414 = arith.constant dense<0.000000e+00> : vector<16x31xf32>
    %474 = tpu.matmul %436, %473, %cst_414 {dimension_numbers = #tpu.dot_dimension_numbers<[1], [0], [0], [1], [0, 0, 1, 1], [], []>} : vector<16x8xf32>, vector<8x31xf32>, vector<16x31xf32> -> vector<16x31xf32>
    %c0_415 = arith.constant 0 : index
    %c4_416 = arith.constant 4 : index
    %c0_417 = arith.constant 0 : index
    %c0_418 = arith.constant 0 : index
    %475 = vector.load %arg8[%c0_415, %c4_416, %c0_417, %c0_418] : memref<1x8x16x31xf32, #tpu.memory_space<vmem>>, vector<1x1x16x31xf32>
    %476 = vector.shape_cast %475 : vector<1x1x16x31xf32> to vector<16x31xf32>
    %477 = vector.shape_cast %474 : vector<16x31xf32> to vector<1x1x16x31xf32>
    tpu.vector_store %arg8[%c0_415, %c4_416, %c0_417, %c0_418], %477 {strides = array<i32>} : memref<1x8x16x31xf32, #tpu.memory_space<vmem>>, vector<1x1x16x31xf32>,
    %c68_419 = arith.constant 68 : index
    %c0_420 = arith.constant 0 : index
    %478 = vector.load %arg10[%c68_419, %c0_420] : memref<72x31xf32, #tpu.memory_space<vmem>>, vector<1x31xf32>
    %c0_421 = arith.constant 0 : index
    %c4_422 = arith.constant 4 : index
    %c15_423 = arith.constant 15 : index
    %c0_424 = arith.constant 0 : index
    %479 = vector.load %arg8[%c0_421, %c4_422, %c15_423, %c0_424] : memref<1x8x16x31xf32, #tpu.memory_space<vmem>>, vector<1x1x1x31xf32>
    %480 = vector.shape_cast %479 : vector<1x1x1x31xf32> to vector<1x31xf32>
    %481 = vector.shape_cast %478 : vector<1x31xf32> to vector<1x1x1x31xf32>
    tpu.vector_store %arg8[%c0_421, %c4_422, %c15_423, %c0_424], %481 {strides = array<i32>} : memref<1x8x16x31xf32, #tpu.memory_space<vmem>>, vector<1x1x1x31xf32>,
    %c40_425 = arith.constant 40 : index
    %c0_426 = arith.constant 0 : index
    %482 = vector.load %arg10[%c40_425, %c0_426] : memref<72x31xf32, #tpu.memory_space<vmem>>, vector<8x31xf32>
    %cst_427 = arith.constant dense<0.000000e+00> : vector<16x31xf32>
    %483 = tpu.matmul %436, %482, %cst_427 {dimension_numbers = #tpu.dot_dimension_numbers<[1], [0], [0], [1], [0, 0, 1, 1], [], []>} : vector<16x8xf32>, vector<8x31xf32>, vector<16x31xf32> -> vector<16x31xf32>
    %c0_428 = arith.constant 0 : index
    %c5_429 = arith.constant 5 : index
    %c0_430 = arith.constant 0 : index
    %c0_431 = arith.constant 0 : index
    %484 = vector.load %arg8[%c0_428, %c5_429, %c0_430, %c0_431] : memref<1x8x16x31xf32, #tpu.memory_space<vmem>>, vector<1x1x16x31xf32>
    %485 = vector.shape_cast %484 : vector<1x1x16x31xf32> to vector<16x31xf32>
    %486 = vector.shape_cast %483 : vector<16x31xf32> to vector<1x1x16x31xf32>
    tpu.vector_store %arg8[%c0_428, %c5_429, %c0_430, %c0_431], %486 {strides = array<i32>} : memref<1x8x16x31xf32, #tpu.memory_space<vmem>>, vector<1x1x16x31xf32>,
    %c69_432 = arith.constant 69 : index
    %c0_433 = arith.constant 0 : index
    %487 = vector.load %arg10[%c69_432, %c0_433] : memref<72x31xf32, #tpu.memory_space<vmem>>, vector<1x31xf32>
    %c0_434 = arith.constant 0 : index
    %c5_435 = arith.constant 5 : index
    %c15_436 = arith.constant 15 : index
    %c0_437 = arith.constant 0 : index
    %488 = vector.load %arg8[%c0_434, %c5_435, %c15_436, %c0_437] : memref<1x8x16x31xf32, #tpu.memory_space<vmem>>, vector<1x1x1x31xf32>
    %489 = vector.shape_cast %488 : vector<1x1x1x31xf32> to vector<1x31xf32>
    %490 = vector.shape_cast %487 : vector<1x31xf32> to vector<1x1x1x31xf32>
    tpu.vector_store %arg8[%c0_434, %c5_435, %c15_436, %c0_437], %490 {strides = array<i32>} : memref<1x8x16x31xf32, #tpu.memory_space<vmem>>, vector<1x1x1x31xf32>,
    %c48_438 = arith.constant 48 : index
    %c0_439 = arith.constant 0 : index
    %491 = vector.load %arg10[%c48_438, %c0_439] : memref<72x31xf32, #tpu.memory_space<vmem>>, vector<8x31xf32>
    %cst_440 = arith.constant dense<0.000000e+00> : vector<16x31xf32>
    %492 = tpu.matmul %436, %491, %cst_440 {dimension_numbers = #tpu.dot_dimension_numbers<[1], [0], [0], [1], [0, 0, 1, 1], [], []>} : vector<16x8xf32>, vector<8x31xf32>, vector<16x31xf32> -> vector<16x31xf32>
    %c0_441 = arith.constant 0 : index
    %c6_442 = arith.constant 6 : index
    %c0_443 = arith.constant 0 : index
    %c0_444 = arith.constant 0 : index
    %493 = vector.load %arg8[%c0_441, %c6_442, %c0_443, %c0_444] : memref<1x8x16x31xf32, #tpu.memory_space<vmem>>, vector<1x1x16x31xf32>
    %494 = vector.shape_cast %493 : vector<1x1x16x31xf32> to vector<16x31xf32>
    %495 = vector.shape_cast %492 : vector<16x31xf32> to vector<1x1x16x31xf32>
    tpu.vector_store %arg8[%c0_441, %c6_442, %c0_443, %c0_444], %495 {strides = array<i32>} : memref<1x8x16x31xf32, #tpu.memory_space<vmem>>, vector<1x1x16x31xf32>,
    %c70_445 = arith.constant 70 : index
    %c0_446 = arith.constant 0 : index
    %496 = vector.load %arg10[%c70_445, %c0_446] : memref<72x31xf32, #tpu.memory_space<vmem>>, vector<1x31xf32>
    %c0_447 = arith.constant 0 : index
    %c6_448 = arith.constant 6 : index
    %c15_449 = arith.constant 15 : index
    %c0_450 = arith.constant 0 : index
    %497 = vector.load %arg8[%c0_447, %c6_448, %c15_449, %c0_450] : memref<1x8x16x31xf32, #tpu.memory_space<vmem>>, vector<1x1x1x31xf32>
    %498 = vector.shape_cast %497 : vector<1x1x1x31xf32> to vector<1x31xf32>
    %499 = vector.shape_cast %496 : vector<1x31xf32> to vector<1x1x1x31xf32>
    tpu.vector_store %arg8[%c0_447, %c6_448, %c15_449, %c0_450], %499 {strides = array<i32>} : memref<1x8x16x31xf32, #tpu.memory_space<vmem>>, vector<1x1x1x31xf32>,
    %c56_451 = arith.constant 56 : index
    %c0_452 = arith.constant 0 : index
    %500 = vector.load %arg10[%c56_451, %c0_452] : memref<72x31xf32, #tpu.memory_space<vmem>>, vector<8x31xf32>
    %cst_453 = arith.constant dense<0.000000e+00> : vector<16x31xf32>
    %501 = tpu.matmul %436, %500, %cst_453 {dimension_numbers = #tpu.dot_dimension_numbers<[1], [0], [0], [1], [0, 0, 1, 1], [], []>} : vector<16x8xf32>, vector<8x31xf32>, vector<16x31xf32> -> vector<16x31xf32>
    %c0_454 = arith.constant 0 : index
    %c7_455 = arith.constant 7 : index
    %c0_456 = arith.constant 0 : index
    %c0_457 = arith.constant 0 : index
    %502 = vector.load %arg8[%c0_454, %c7_455, %c0_456, %c0_457] : memref<1x8x16x31xf32, #tpu.memory_space<vmem>>, vector<1x1x16x31xf32>
    %503 = vector.shape_cast %502 : vector<1x1x16x31xf32> to vector<16x31xf32>
    %504 = vector.shape_cast %501 : vector<16x31xf32> to vector<1x1x16x31xf32>
    tpu.vector_store %arg8[%c0_454, %c7_455, %c0_456, %c0_457], %504 {strides = array<i32>} : memref<1x8x16x31xf32, #tpu.memory_space<vmem>>, vector<1x1x16x31xf32>,
    %c71_458 = arith.constant 71 : index
    %c0_459 = arith.constant 0 : index
    %505 = vector.load %arg10[%c71_458, %c0_459] : memref<72x31xf32, #tpu.memory_space<vmem>>, vector<1x31xf32>
    %c0_460 = arith.constant 0 : index
    %c7_461 = arith.constant 7 : index
    %c15_462 = arith.constant 15 : index
    %c0_463 = arith.constant 0 : index
    %506 = vector.load %arg8[%c0_460, %c7_461, %c15_462, %c0_463] : memref<1x8x16x31xf32, #tpu.memory_space<vmem>>, vector<1x1x1x31xf32>
    %507 = vector.shape_cast %506 : vector<1x1x1x31xf32> to vector<1x31xf32>
    %508 = vector.shape_cast %505 : vector<1x31xf32> to vector<1x1x1x31xf32>
    tpu.vector_store %arg8[%c0_460, %c7_461, %c15_462, %c0_463], %508 {strides = array<i32>} : memref<1x8x16x31xf32, #tpu.memory_space<vmem>>, vector<1x1x1x31xf32>,
    return
  }
  func.func @transform_0(%arg0: i32, %arg1: i32) -> (i32, i32, i32, i32) {
    %c0_i32 = arith.constant 0 : i32
    %c0_i32_0 = arith.constant 0 : i32
    %c0_i32_1 = arith.constant 0 : i32
    return %arg0, %c0_i32, %arg1, %c0_i32_0 : i32, i32, i32, i32
  }
  func.func @transform_1(%arg0: i32, %arg1: i32) -> (i32, i32, i32, i32) {
    %c0_i32 = arith.constant 0 : i32
    %c0_i32_0 = arith.constant 0 : i32
    %c0_i32_1 = arith.constant 0 : i32
    return %arg0, %arg1, %c0_i32, %c0_i32_0 : i32, i32, i32, i32
  }
  func.func @transform_2(%arg0: i32, %arg1: i32) -> (i32, i32) {
    %c0_i32 = arith.constant 0 : i32
    %c0_i32_0 = arith.constant 0 : i32
    %c0_i32_1 = arith.constant 0 : i32
    return %c0_i32, %c0_i32_0 : i32, i32
  }
  func.func @transform_3(%arg0: i32, %arg1: i32) -> (i32, i32) {
    %c0_i32 = arith.constant 0 : i32
    %c0_i32_0 = arith.constant 0 : i32
    %c0_i32_1 = arith.constant 0 : i32
    return %c0_i32, %c0_i32_0 : i32, i32
  }
  func.func @transform_4(%arg0: i32, %arg1: i32) -> (i32, i32) {
    %c0_i32 = arith.constant 0 : i32
    %c0_i32_0 = arith.constant 0 : i32
    %c0_i32_1 = arith.constant 0 : i32
    return %c0_i32, %c0_i32_0 : i32, i32
  }
  func.func @transform_5(%arg0: i32, %arg1: i32) -> i32 {
    %c0_i32 = arith.constant 0 : i32
    %c0_i32_0 = arith.constant 0 : i32
    return %c0_i32 : i32
  }
  func.func @transform_6(%arg0: i32, %arg1: i32) -> (i32, i32, i32, i32) {
    %c0_i32 = arith.constant 0 : i32
    %c0_i32_0 = arith.constant 0 : i32
    %c0_i32_1 = arith.constant 0 : i32
    return %arg0, %c0_i32, %arg1, %c0_i32_0 : i32, i32, i32, i32
  }
}

</mosaic_0001>

<llo_original>
// kernel: tpu_custom_call.1
$region0: #{tpu_custom_call.1}
  #allocation0 [shape = 'u32[]', space=smem, size = 0x4, offset = 0x4, fixed_abs, tag = 'smem constant byte address 0x4 - core index']
  #allocation1 [shape = 'u32[72,128]{1,0:T(1,128)}', space=vmem, size = 0x9000, scoped, tag = 'internal scratch']
  #allocation2 [shape = 'f32[72,16]{1,0:T(8,128)}', space=vmem, size = 0x9000, scoped, tag = 'scratch operand']
  #allocation3 [shape = 'f32[72,31]{1,0:T(8,128)}', space=vmem, size = 0x9000, scoped, tag = 'scratch operand']
  %s0 = inlined_call_operand.hbm [shape: f32[2,4,16,16], index: 0, kind: input, shape index: {}]
  %s1 = inlined_call_operand.vmem [shape: f32[2,2,4,16], index: 1, kind: input, shape index: {}]
  %s2 = inlined_call_operand.vmem [shape: f32[16,31], index: 2, kind: input, shape index: {}]
  %s3 = inlined_call_operand.vmem [shape: f32[16,8], index: 3, kind: input, shape index: {}]
  %s4 = inlined_call_operand.vmem [shape: f32[8,4], index: 4, kind: input, shape index: {}]
  %s5 = inlined_call_operand.vmem [shape: f32[8], index: 5, kind: input, shape index: {}]
  %s6 = inlined_call_operand.vmem [shape: f32[2,8,31,31], index: 6, kind: output, shape index: {}]
  %s7 = sld [smem:[#allocation0]]
  $region103: #{tpu_custom_call.1} parent=0
    _
  %s9 = ssub.s32 1, %s7
  %s10 = scalar_select 0, %s9, %s7
  $region1: #{tpu_custom_call.1} parent=0
    #allocation4 [shape = 'u8[32768]{0}', space=vmem, size = 0x8000, scoped, tag = 'input window, operand 0']
    #allocation5 [shape = 's32[2]{0}', space=sflag, size = 0x8, scoped, tag = 'scoped memory for tpu_custom_call.1']
    #allocation6 [shape = 's32[2]{0}', space=sflag, size = 0x8, scoped, tag = 'scoped memory for tpu_custom_call.1']
    #allocation7 [shape = 'u8[4096]{0}', space=smem, size = 0x1000, scoped, tag = 'input window, operand 4, single buffered']
    #allocation8 [shape = 'u8[512]{0}', space=smem, size = 0x200, scoped, tag = 'input window, operand 5, single buffered']
    #allocation9 [shape = 's32[1]{0}', space=sflag, size = 0x4, scoped, tag = 'scoped memory for tpu_custom_call.1']
    #allocation10 [shape = 'u8[131072]{0}', space=vmem, size = 0x20000, scoped, tag = 'output window, operand 0']
    %11 = vsyncpa [#allocation5], 0
    %s12 = scalar_lea.sflag [#allocation5], 1
    %13 = vsyncpa %s12, 0
    %14 = vsyncpa [#allocation6], 0
    %15 = vsyncpa [#allocation9], 0
    loop: start=0, step=1, limit=6
    $region2: #{tpu_custom_call.1} parent=1 // loop_pre_header
      _
    $region3: #{tpu_custom_call.1} parent=1 // loop_header
      %s17 = sphi 0, %s21
      %p18 = scmp.ge.s32.totalorder %s17, 6
      %s24 = sphi 0, %s36
      %s25 = sphi 0, %s32
      %s26 = sphi 0, %s24
      %s27 = sphi 0, %s25
      %s28 = sphi 0, %s26
      %s29 = sphi 0, %s27
      %s41 = sphi 0, %s43
      %s44 = sphi 0, %s41
      %s45 = sphi 0, %s44
      %s61 = sphi 0, %s45
      %s69 = sphi 0, %s71
      %s72 = sphi 0, %s69
      %s73 = sphi 0, %s72
      %s89 = sphi 0, %s73
      %s93 = sphi 0, %s93
      %s95 = sphi 0, %s93
      %s96 = sphi 0, %s95
      %s110 = sphi 0, %s96
      %s114 = sphi 0, %s114
      %s116 = sphi 0, %s114
      %s117 = sphi 0, %s116
      %s131 = sphi 0, %s117
      %s135 = sphi 0, %s135
      %s137 = sphi 0, %s135
      %s138 = sphi 0, %s137
      %s152 = sphi 0, %s138
      %s156 = sphi 0, %s156
      %s158 = sphi 0, %s156
      %s159 = sphi 0, %s158
      %s173 = sphi 0, %s159
      %s181 = sphi 0, %s183
      %s184 = sphi 0, %s181
      %s185 = sphi 0, %s184
      %s201 = sphi 0, %s185
    $region4: #{tpu_custom_call.1} parent=1 // loop_header_branch
      %20 = sbr.rel (%p18) target = $region8
    $region5: #{tpu_custom_call.1} parent=1 // loop_body
      %s22 = ssub.s32 %s17, 1
      %s23 = ssub.s32 %s17, 2
      %s30 = sadd.s32 1, %s25
      %p31 = scmp.ge.s32.totalorder %s30, 2
      %s32 = scalar_select %p31, 0, %s30
      %s33 = sadd.s32 1, %s24
      %s34 = scalar_select %p31, %s33, %s24
      %p35 = scmp.ge.s32.totalorder %s34, 2
      %s36 = scalar_select %p35, 0, %s34
      %s37 = ssub.s32 %s24, %s36
      %s38 = ssub.s32 %s25, %s32
      %s39 = sor.u32 %s37, %s38
      %p40 = scmp.eq.s32.totalorder %s39, 0
      %s42 = sadd.s32 %s41, 1
      %s43 = scalar_select %p40, %s41, %s42
      %p46 = pneg %p40
      %p47 = scmp.eq.s32.totalorder %s17, 3
      %p48 = por %p46, %p47
      %p49 = scmp.ne.s32.totalorder %s41, %s44
      %p50 = scmp.eq.s32.totalorder %s17, 0
      %p51 = por %p49, %p50
      %p52 = scmp.ne.s32.totalorder %s41, %s44
      %p53 = scmp.eq.s32.totalorder %s22, 3
      %p54 = por %p52, %p53
      %p55 = scmp.ne.s32.totalorder %s44, %s45
      %p56 = scmp.eq.s32.totalorder %s22, 0
      %p57 = por %p55, %p56
      %p58 = scmp.ne.s32.totalorder %s44, %s45
      %p59 = scmp.eq.s32.totalorder %s23, 3
      %p60 = por %p58, %p59
      %p62 = scmp.ne.s32.totalorder %s45, %s61
      %p63 = scmp.eq.s32.totalorder %s23, 0
      %p64 = por %p62, %p63
      %s65 = ssub.s32 %s24, %s36
      %s66 = ssub.s32 %s25, %s32
      %s67 = sor.u32 %s65, %s66
      %p68 = scmp.eq.s32.totalorder %s67, 0
      %s70 = sadd.s32 %s69, 1
      %s71 = scalar_select %p68, %s69, %s70
      %p74 = pneg %p68
      %p75 = scmp.eq.s32.totalorder %s17, 3
      %p76 = por %p74, %p75
      %p77 = scmp.ne.s32.totalorder %s69, %s72
      %p78 = scmp.eq.s32.totalorder %s17, 0
      %p79 = por %p77, %p78
      %p80 = scmp.ne.s32.totalorder %s69, %s72
      %p81 = scmp.eq.s32.totalorder %s22, 3
      %p82 = por %p80, %p81
      %p83 = scmp.ne.s32.totalorder %s72, %s73
      %p84 = scmp.eq.s32.totalorder %s22, 0
      %p85 = por %p83, %p84
      %p86 = scmp.ne.s32.totalorder %s72, %s73
      %p87 = scmp.eq.s32.totalorder %s23, 3
      %p88 = por %p86, %p87
      %p90 = scmp.ne.s32.totalorder %s73, %s89
      %p91 = scmp.eq.s32.totalorder %s23, 0
      %p92 = por %p90, %p91
      %s94 = sadd.s32 %s93, 1
      %p97 = scmp.eq.s32.totalorder %s17, 3
      %p98 = scmp.ne.s32.totalorder %s93, %s95
      %p99 = scmp.eq.s32.totalorder %s17, 0
      %p100 = por %p98, %p99
      %p101 = scmp.ne.s32.totalorder %s93, %s95
      %p102 = scmp.eq.s32.totalorder %s22, 3
      %p103 = por %p101, %p102
      %p104 = scmp.ne.s32.totalorder %s95, %s96
      %p105 = scmp.eq.s32.totalorder %s22, 0
      %p106 = por %p104, %p105
      %p107 = scmp.ne.s32.totalorder %s95, %s96
      %p108 = scmp.eq.s32.totalorder %s23, 3
      %p109 = por %p107, %p108
      %p111 = scmp.ne.s32.totalorder %s96, %s110
      %p112 = scmp.eq.s32.totalorder %s23, 0
      %p113 = por %p111, %p112
      %s115 = sadd.s32 %s114, 1
      %p118 = scmp.eq.s32.totalorder %s17, 3
      %p119 = scmp.ne.s32.totalorder %s114, %s116
      %p120 = scmp.eq.s32.totalorder %s17, 0
      %p121 = por %p119, %p120
      %p122 = scmp.ne.s32.totalorder %s114, %s116
      %p123 = scmp.eq.s32.totalorder %s22, 3
      %p124 = por %p122, %p123
      %p125 = scmp.ne.s32.totalorder %s116, %s117
      %p126 = scmp.eq.s32.totalorder %s22, 0
      %p127 = por %p125, %p126
      %p128 = scmp.ne.s32.totalorder %s116, %s117
      %p129 = scmp.eq.s32.totalorder %s23, 3
      %p130 = por %p128, %p129
      %p132 = scmp.ne.s32.totalorder %s117, %s131
      %p133 = scmp.eq.s32.totalorder %s23, 0
      %p134 = por %p132, %p133
      %s136 = sadd.s32 %s135, 1
      %p139 = scmp.eq.s32.totalorder %s17, 3
      %p140 = scmp.ne.s32.totalorder %s135, %s137
      %p141 = scmp.eq.s32.totalorder %s17, 0
      %p142 = por %p140, %p141
      %p143 = scmp.ne.s32.totalorder %s135, %s137
      %p144 = scmp.eq.s32.totalorder %s22, 3
      %p145 = por %p143, %p144
      %p146 = scmp.ne.s32.totalorder %s137, %s138
      %p147 = scmp.eq.s32.totalorder %s22, 0
      %p148 = por %p146, %p147
      %p149 = scmp.ne.s32.totalorder %s137, %s138
      %p150 = scmp.eq.s32.totalorder %s23, 3
      %p151 = por %p149, %p150
      %p153 = scmp.ne.s32.totalorder %s138, %s152
      %p154 = scmp.eq.s32.totalorder %s23, 0
      %p155 = por %p153, %p154
      %s157 = sadd.s32 %s156, 1
      %p160 = scmp.eq.s32.totalorder %s17, 3
      %p161 = scmp.ne.s32.totalorder %s156, %s158
      %p162 = scmp.eq.s32.totalorder %s17, 0
      %p163 = por %p161, %p162
      %p164 = scmp.ne.s32.totalorder %s156, %s158
      %p165 = scmp.eq.s32.totalorder %s22, 3
      %p166 = por %p164, %p165
      %p167 = scmp.ne.s32.totalorder %s158, %s159
      %p168 = scmp.eq.s32.totalorder %s22, 0
      %p169 = por %p167, %p168
      %p170 = scmp.ne.s32.totalorder %s158, %s159
      %p171 = scmp.eq.s32.totalorder %s23, 3
      %p172 = por %p170, %p171
      %p174 = scmp.ne.s32.totalorder %s159, %s173
      %p175 = scmp.eq.s32.totalorder %s23, 0
      %p176 = por %p174, %p175
      %s177 = ssub.s32 %s24, %s36
      %s178 = ssub.s32 %s25, %s32
      %s179 = sor.u32 %s177, %s178
      %p180 = scmp.eq.s32.totalorder %s179, 0
      %s182 = sadd.s32 %s181, 1
      %s183 = scalar_select %p180, %s181, %s182
      %p186 = pneg %p180
      %p187 = scmp.eq.s32.totalorder %s17, 3
      %p188 = por %p186, %p187
      %p189 = scmp.ne.s32.totalorder %s181, %s184
      %p190 = scmp.eq.s32.totalorder %s17, 0
      %p191 = por %p189, %p190
      %p192 = scmp.ne.s32.totalorder %s181, %s184
      %p193 = scmp.eq.s32.totalorder %s22, 3
      %p194 = por %p192, %p193
      %p195 = scmp.ne.s32.totalorder %s184, %s185
      %p196 = scmp.eq.s32.totalorder %s22, 0
      %p197 = por %p195, %p196
      %p198 = scmp.ne.s32.totalorder %s184, %s185
      %p199 = scmp.eq.s32.totalorder %s23, 3
      %p200 = por %p198, %p199
      %p202 = scmp.ne.s32.totalorder %s185, %s201
      %p203 = scmp.eq.s32.totalorder %s23, 0
      %p204 = por %p202, %p203
      %p205 = scmp.le.s32.totalorder 1, %s17
      %p206 = scmp.lt.s32.totalorder %s17, 5
      %p207 = pnand %p205, %p206
      %p208 = pneg %p207
      // Predicated region
      $region9: #{tpu_custom_call.1} parent=5 // pred_check
        _
      $region10: #{tpu_custom_call.1} parent=5 // pred_check_branch
        %210 = sbr.rel (%p207) target = $region12
      $region11: #{tpu_custom_call.1} parent=5 // pred_region
        %s211 = ssub.s32 %s17, 1
        // Predicated region
        $region13: #{tpu_custom_call.1} parent=11 // pred_check
          %p212 = pneg %p106
        $region14: #{tpu_custom_call.1} parent=11 // pred_check_branch
          %214 = sbr.rel (%p212) target = $region16
        $region15: #{tpu_custom_call.1} parent=11 // pred_region
          _
        $region16: #{tpu_custom_call.1} parent=11 // pred_fallthru
          _
        // Predicated region
        $region17: #{tpu_custom_call.1} parent=11 // pred_check
          %p215 = pneg %p127
        $region18: #{tpu_custom_call.1} parent=11 // pred_check_branch
          %217 = sbr.rel (%p215) target = $region20
        $region19: #{tpu_custom_call.1} parent=11 // pred_region
          _
        $region20: #{tpu_custom_call.1} parent=11 // pred_fallthru
          _
        // Predicated region
        $region21: #{tpu_custom_call.1} parent=11 // pred_check
          %p218 = pneg %p148
        $region22: #{tpu_custom_call.1} parent=11 // pred_check_branch
          %220 = sbr.rel (%p218) target = $region24
        $region23: #{tpu_custom_call.1} parent=11 // pred_region
          %222 = vsyncadd [#allocation6], 0
          %s224 = sshll.u32 %s4, 4
          %s225 = int_to_ptr.vmem [resolvable:$true] %s224
          %227 = dma.vmem_to_smem %s225, 128, [#allocation7], [#allocation6]
        $region24: #{tpu_custom_call.1} parent=11 // pred_fallthru
          _
        // Predicated region
        $region25: #{tpu_custom_call.1} parent=11 // pred_check
          %p228 = pneg %p169
        $region26: #{tpu_custom_call.1} parent=11 // pred_check_branch
          %230 = sbr.rel (%p228) target = $region28
        $region27: #{tpu_custom_call.1} parent=11 // pred_region
          %232 = vsyncadd [#allocation9], 0
          %s234 = sshll.u32 %s5, 4
          %s235 = int_to_ptr.vmem [resolvable:$true] %s234
          %237 = dma.vmem_to_smem %s235, 16, [#allocation8], [#allocation9]
        $region28: #{tpu_custom_call.1} parent=11 // pred_fallthru
          _
      $region12: #{tpu_custom_call.1} parent=5 // pred_fallthru
        _
      %p238 = scmp.lt.s32.totalorder %s17, 4
      // Predicated region
      $region29: #{tpu_custom_call.1} parent=5 // pred_check
        %p239 = pneg %p238
      $region30: #{tpu_custom_call.1} parent=5 // pred_check_branch
        %241 = sbr.rel (%p239) target = $region32
      $region31: #{tpu_custom_call.1} parent=5 // pred_region
        // Predicated region
        $region33: #{tpu_custom_call.1} parent=31 // pred_check
          %p242 = pneg %p51
        $region34: #{tpu_custom_call.1} parent=31 // pred_check_branch
          %244 = sbr.rel (%p242) target = $region36
        $region35: #{tpu_custom_call.1} parent=31 // pred_region
          %s245 = sand.u32 %s41, 1
          %s246 = scalar_lea.sflag [#allocation5], %s245
          %s247 = sand.u32 %s41, 1
          %s248 = smul.addr %s247, 32
          %s249 = scalar_lea.vmem [#allocation4], %s248
          %251 = vsyncadd %s246, 0
          %s252 = smul.addr %s24, 8
          %s253 = sadd.s32 %s25, %s252
          %s254 = smul.addr %s253, 8
          %s255 = scalar_lea.hbm %s0, %s254
          %s256 = sshll.u32 %s255, 4
          %s257 = int_to_ptr.hbm [resolvable:$true] %s256
          %s258 = sshll.u32 %s249, 4
          %s259 = int_to_ptr.vmem [resolvable:$true] %s258
          %264 = dma.hbm_to_vmem [thread:$0]  %s257, 512, %s259, %s246, 256, 128, 8
        $region36: #{tpu_custom_call.1} parent=31 // pred_fallthru
          _
        // Predicated region
        $region37: #{tpu_custom_call.1} parent=31 // pred_check
          %p265 = pneg %p79
        $region38: #{tpu_custom_call.1} parent=31 // pred_check_branch
          %267 = sbr.rel (%p265) target = $region40
        $region39: #{tpu_custom_call.1} parent=31 // pred_region
          %p268 = scmp.lt.s32.totalorder %s24, 1
          %s269 = scalar_select %p268, %s24, 1
          %p270 = scmp.lt.s32.totalorder %s25, 1
          %s271 = scalar_select %p270, %s25, 1
          %s272 = smul.addr %s269, 2
          %s273 = sadd.s32 %s271, %s272
          %s274 = smul.addr %s273, 4
          %s275 = scalar_lea.vmem %s1, %s274
        $region40: #{tpu_custom_call.1} parent=31 // pred_fallthru
          _
      $region32: #{tpu_custom_call.1} parent=5 // pred_fallthru
        _
      %p276 = scmp.le.s32.totalorder 1, %s17
      %p277 = scmp.lt.s32.totalorder %s17, 5
      %p278 = pnand %p276, %p277
      %p279 = pneg %p278
      // Predicated region
      $region41: #{tpu_custom_call.1} parent=5 // pred_check
        _
      $region42: #{tpu_custom_call.1} parent=5 // pred_check_branch
        %281 = sbr.rel (%p278) target = $region44
      $region43: #{tpu_custom_call.1} parent=5 // pred_region
        %s282 = ssub.s32 %s17, 1
        %s283 = sand.u32 %s44, 1
        %s284 = scalar_lea.sflag [#allocation5], %s283
        %s285 = sand.u32 %s44, 1
        %s286 = smul.addr %s285, 32
        %s287 = scalar_lea.vmem [#allocation4], %s286
        // Predicated region
        $region45: #{tpu_custom_call.1} parent=43 // pred_check
          %p288 = pneg %p57
        $region46: #{tpu_custom_call.1} parent=43 // pred_check_branch
          %290 = sbr.rel (%p288) target = $region48
        $region47: #{tpu_custom_call.1} parent=43 // pred_region
          %292 = dma.done %s284, 512
        $region48: #{tpu_custom_call.1} parent=43 // pred_fallthru
          _
        // Predicated region
        $region49: #{tpu_custom_call.1} parent=43 // pred_check
          %p293 = pneg %p148
        $region50: #{tpu_custom_call.1} parent=43 // pred_check_branch
          %295 = sbr.rel (%p293) target = $region52
        $region51: #{tpu_custom_call.1} parent=43 // pred_region
          %297 = dma.done [#allocation6], 128
        $region52: #{tpu_custom_call.1} parent=43 // pred_fallthru
          _
        // Predicated region
        $region53: #{tpu_custom_call.1} parent=43 // pred_check
          %p298 = pneg %p169
        $region54: #{tpu_custom_call.1} parent=43 // pred_check_branch
          %300 = sbr.rel (%p298) target = $region56
        $region55: #{tpu_custom_call.1} parent=43 // pred_region
          %302 = dma.done [#allocation9], 16
        $region56: #{tpu_custom_call.1} parent=43 // pred_fallthru
          _
        %303 = sfence
        %s304 = sand.u32 %s44, 1
        %s305 = scalar_lea.sflag [#allocation5], %s304
        %s306 = sand.u32 %s44, 1
        %s307 = smul.addr %s306, 32
        %s308 = scalar_lea.vmem [#allocation4], %s307
        %p309 = pneg %p57
        %p310 = pneg %p54
        %p311 = scmp.lt.s32.totalorder %s26, 1
        %s312 = scalar_select %p311, %s26, 1
        %p313 = scmp.lt.s32.totalorder %s27, 1
        %s314 = scalar_select %p313, %s27, 1
        %s315 = smul.addr %s312, 2
        %s316 = sadd.s32 %s314, %s315
        %s317 = smul.addr %s316, 4
        %s318 = scalar_lea.vmem %s1, %s317
        %p319 = pneg %p85
        %p320 = pneg %p82
        %p321 = pneg %p106
        %p322 = pneg %p103
        %p323 = pneg %p127
        %p324 = pneg %p124
        %p325 = pneg %p148
        %p326 = pneg %p145
        %p327 = pneg %p169
        %p328 = pneg %p166
        %p329 = pneg %p197
        %p330 = pneg %p194
        %s331 = sand.u32 %s184, 1
        %s332 = sand.u32 %s184, 1
        %s333 = smul.addr %s332, 128
        %s334 = scalar_lea.vmem [#allocation10], %s333
        %p335 = scmp.lt.s32.totalorder %s26, 1
        %s336 = scalar_select %p335, %s26, 1
        %p337 = scmp.lt.s32.totalorder %s27, 1
        %s338 = scalar_select %p337, %s27, 1
        %s339 = smul.addr %s336, 2
        %s340 = sadd.s32 %s338, %s339
        %s341 = smul.addr %s340, 4
        %s342 = scalar_lea.vmem %s1, %s341
        %s343 = smul.u32 2, %s27
        %s344 = sld [smem:[#allocation8]]
        %v345 = vstv %s344
        %s346 = sld [smem:[#allocation7]]
        %v347 = vld [vmem:[%s287] sm:$0xff]
        %v348 = vstv %s346
        %v349 = vmul.f32 %v348, %v347
        %v350 = vadd.f32 %v345, %v349
        %v351 = vld [vmem:[%s342] sm:$0x1]
        %v352 = vmul.f32 %v348, %v351
        %v353 = vadd.f32 %v345, %v352
        %s354 = sld [smem:[#allocation7 + $0x1]]
        %s355 = scalar_lea.vmem %s287, 8 [#allocation4]
        %v356 = vld [vmem:[%s355] sm:$0xff]
        %v357 = vstv %s354
        %v358 = vmul.f32 %v357, %v356
        %v359 = vadd.f32 %v350, %v358
        %v360 = vld [vmem:[%s342 + $0x1] sm:$0x1]
        %v361 = vmul.f32 %v357, %v360
        %v362 = vadd.f32 %v353, %v361
        %s363 = sld [smem:[#allocation7 + $0x2]]
        %s364 = scalar_lea.vmem %s287, 16 [#allocation4]
        %v365 = vld [vmem:[%s364] sm:$0xff]
        %v366 = vstv %s363
        %v367 = vmul.f32 %v366, %v365
        %v368 = vadd.f32 %v359, %v367
        %v369 = vld [vmem:[%s342 + $0x2] sm:$0x1]
        %v370 = vmul.f32 %v366, %v369
        %v371 = vadd.f32 %v362, %v370
        %s372 = sld [smem:[#allocation7 + $0x3]]
        %s373 = scalar_lea.vmem %s287, 24 [#allocation4]
        %v374 = vld [vmem:[%s373] sm:$0xff]
        %v375 = vstv %s372
        %v376 = vmul.f32 %v375, %v374
        %v377 = vadd.f32 %v368, %v376
        %v378 = vld [vmem:[%s342 + $0x3] sm:$0x1]
        %v379 = vmul.f32 %v375, %v378
        %v380 = vadd.f32 %v371, %v379
        %vm381 = vcmask 130048
        %382 = vst.msk [vmem:[#allocation2] sm:$0xff] %vm381, %v377
        %v384 = vrot.slane %v380, 1
        %v386 = vadd.f32 %v377, %v384
        %v387 = vmul.f32 %v386, 0.5
        %vm388 = vcmask 130055
        %389 = vst.msk [vmem:[#allocation2 + $0x39] sm:$0x80] %vm388, %v387
        %s390 = sld [smem:[#allocation8 + $0x1]]
        %v391 = vstv %s390
        %s392 = sld [smem:[#allocation7 + $0x80]]
        %v393 = vld [vmem:[%s287] sm:$0xff]
        %v394 = vstv %s392
        %v395 = vmul.f32 %v394, %v393
        %v396 = vadd.f32 %v391, %v395
        %v397 = vld [vmem:[%s342] sm:$0x1]
        %v398 = vmul.f32 %v394, %v397
        %v399 = vadd.f32 %v391, %v398
        %s400 = sld [smem:[#allocation7 + $0x81]]
        %v401 = vld [vmem:[%s355] sm:$0xff]
        %v402 = vstv %s400
        %v403 = vmul.f32 %v402, %v401
        %v404 = vadd.f32 %v396, %v403
        %v405 = vld [vmem:[%s342 + $0x1] sm:$0x1]
        %v406 = vmul.f32 %v402, %v405
        %v407 = vadd.f32 %v399, %v406
        %s408 = sld [smem:[#allocation7 + $0x82]]
        %v409 = vld [vmem:[%s364] sm:$0xff]
        %v410 = vstv %s408
        %v411 = vmul.f32 %v410, %v409
        %v412 = vadd.f32 %v404, %v411
        %v413 = vld [vmem:[%s342 + $0x2] sm:$0x1]
        %v414 = vmul.f32 %v410, %v413
        %v415 = vadd.f32 %v407, %v414
        %s416 = sld [smem:[#allocation7 + $0x83]]
        %v417 = vld [vmem:[%s373] sm:$0xff]
        %v418 = vstv %s416
        %v419 = vmul.f32 %v418, %v417
        %v420 = vadd.f32 %v412, %v419
        %v421 = vld [vmem:[%s342 + $0x3] sm:$0x1]
        %v422 = vmul.f32 %v418, %v421
        %v423 = vadd.f32 %v415, %v422
        %424 = vst.msk [vmem:[#allocation2 + $0x8] sm:$0xff] %vm381, %v420
        %v426 = vrot.slane %v423, 1
        %v428 = vadd.f32 %v420, %v426
        %v429 = vmul.f32 %v428, 0.5
        %430 = vst.msk [vmem:[#allocation2 + $0x3a] sm:$0x80] %vm388, %v429
        %s431 = sld [smem:[#allocation8 + $0x2]]
        %v432 = vstv %s431
        %s433 = sld [smem:[#allocation7 + $0x100]]
        %v434 = vld [vmem:[%s287] sm:$0xff]
        %v435 = vstv %s433
        %v436 = vmul.f32 %v435, %v434
        %v437 = vadd.f32 %v432, %v436
        %v438 = vld [vmem:[%s342] sm:$0x1]
        %v439 = vmul.f32 %v435, %v438
        %v440 = vadd.f32 %v432, %v439
        %s441 = sld [smem:[#allocation7 + $0x101]]
        %v442 = vld [vmem:[%s355] sm:$0xff]
        %v443 = vstv %s441
        %v444 = vmul.f32 %v443, %v442
        %v445 = vadd.f32 %v437, %v444
        %v446 = vld [vmem:[%s342 + $0x1] sm:$0x1]
        %v447 = vmul.f32 %v443, %v446
        %v448 = vadd.f32 %v440, %v447
        %s449 = sld [smem:[#allocation7 + $0x102]]
        %v450 = vld [vmem:[%s364] sm:$0xff]
        %v451 = vstv %s449
        %v452 = vmul.f32 %v451, %v450
        %v453 = vadd.f32 %v445, %v452
        %v454 = vld [vmem:[%s342 + $0x2] sm:$0x1]
        %v455 = vmul.f32 %v451, %v454
        %v456 = vadd.f32 %v448, %v455
        %s457 = sld [smem:[#allocation7 + $0x103]]
        %v458 = vld [vmem:[%s373] sm:$0xff]
        %v459 = vstv %s457
        %v460 = vmul.f32 %v459, %v458
        %v461 = vadd.f32 %v453, %v460
        %v462 = vld [vmem:[%s342 + $0x3] sm:$0x1]
        %v463 = vmul.f32 %v459, %v462
        %v464 = vadd.f32 %v456, %v463
        %465 = vst.msk [vmem:[#allocation2 + $0x10] sm:$0xff] %vm381, %v461
        %v467 = vrot.slane %v464, 1
        %v469 = vadd.f32 %v461, %v467
        %v470 = vmul.f32 %v469, 0.5
        %471 = vst.msk [vmem:[#allocation2 + $0x3b] sm:$0x80] %vm388, %v470
        %s472 = sld [smem:[#allocation8 + $0x3]]
        %v473 = vstv %s472
        %s474 = sld [smem:[#allocation7 + $0x180]]
        %v475 = vld [vmem:[%s287] sm:$0xff]
        %v476 = vstv %s474
        %v477 = vmul.f32 %v476, %v475
        %v478 = vadd.f32 %v473, %v477
        %v479 = vld [vmem:[%s342] sm:$0x1]
        %v480 = vmul.f32 %v476, %v479
        %v481 = vadd.f32 %v473, %v480
        %s482 = sld [smem:[#allocation7 + $0x181]]
        %v483 = vld [vmem:[%s355] sm:$0xff]
        %v484 = vstv %s482
        %v485 = vmul.f32 %v484, %v483
        %v486 = vadd.f32 %v478, %v485
        %v487 = vld [vmem:[%s342 + $0x1] sm:$0x1]
        %v488 = vmul.f32 %v484, %v487
        %v489 = vadd.f32 %v481, %v488
        %s490 = sld [smem:[#allocation7 + $0x182]]
        %v491 = vld [vmem:[%s364] sm:$0xff]
        %v492 = vstv %s490
        %v493 = vmul.f32 %v492, %v491
        %v494 = vadd.f32 %v486, %v493
        %v495 = vld [vmem:[%s342 + $0x2] sm:$0x1]
        %v496 = vmul.f32 %v492, %v495
        %v497 = vadd.f32 %v489, %v496
        %s498 = sld [smem:[#allocation7 + $0x183]]
        %v499 = vld [vmem:[%s373] sm:$0xff]
        %v500 = vstv %s498
        %v501 = vmul.f32 %v500, %v499
        %v502 = vadd.f32 %v494, %v501
        %v503 = vld [vmem:[%s342 + $0x3] sm:$0x1]
        %v504 = vmul.f32 %v500, %v503
        %v505 = vadd.f32 %v497, %v504
        %506 = vst.msk [vmem:[#allocation2 + $0x18] sm:$0xff] %vm381, %v502
        %v508 = vrot.slane %v505, 1
        %v510 = vadd.f32 %v502, %v508
        %v511 = vmul.f32 %v510, 0.5
        %512 = vst.msk [vmem:[#allocation2 + $0x3c] sm:$0x80] %vm388, %v511
        %s513 = sld [smem:[#allocation8 + $0x4]]
        %v514 = vstv %s513
        %s515 = sld [smem:[#allocation7 + $0x200]]
        %v516 = vld [vmem:[%s287] sm:$0xff]
        %v517 = vstv %s515
        %v518 = vmul.f32 %v517, %v516
        %v519 = vadd.f32 %v514, %v518
        %v520 = vld [vmem:[%s342] sm:$0x1]
        %v521 = vmul.f32 %v517, %v520
        %v522 = vadd.f32 %v514, %v521
        %s523 = sld [smem:[#allocation7 + $0x201]]
        %v524 = vld [vmem:[%s355] sm:$0xff]
        %v525 = vstv %s523
        %v526 = vmul.f32 %v525, %v524
        %v527 = vadd.f32 %v519, %v526
        %v528 = vld [vmem:[%s342 + $0x1] sm:$0x1]
        %v529 = vmul.f32 %v525, %v528
        %v530 = vadd.f32 %v522, %v529
        %s531 = sld [smem:[#allocation7 + $0x202]]
        %v532 = vld [vmem:[%s364] sm:$0xff]
        %v533 = vstv %s531
        %v534 = vmul.f32 %v533, %v532
        %v535 = vadd.f32 %v527, %v534
        %v536 = vld [vmem:[%s342 + $0x2] sm:$0x1]
        %v537 = vmul.f32 %v533, %v536
        %v538 = vadd.f32 %v530, %v537
        %s539 = sld [smem:[#allocation7 + $0x203]]
        %v540 = vld [vmem:[%s373] sm:$0xff]
        %v541 = vstv %s539
        %v542 = vmul.f32 %v541, %v540
        %v543 = vadd.f32 %v535, %v542
        %v544 = vld [vmem:[%s342 + $0x3] sm:$0x1]
        %v545 = vmul.f32 %v541, %v544
        %v546 = vadd.f32 %v538, %v545
        %547 = vst.msk [vmem:[#allocation2 + $0x20] sm:$0xff] %vm381, %v543
        %v549 = vrot.slane %v546, 1
        %v551 = vadd.f32 %v543, %v549
        %v552 = vmul.f32 %v551, 0.5
        %553 = vst.msk [vmem:[#allocation2 + $0x3d] sm:$0x80] %vm388, %v552
        %s554 = sld [smem:[#allocation8 + $0x5]]
        %v555 = vstv %s554
        %s556 = sld [smem:[#allocation7 + $0x280]]
        %v557 = vld [vmem:[%s287] sm:$0xff]
        %v558 = vstv %s556
        %v559 = vmul.f32 %v558, %v557
        %v560 = vadd.f32 %v555, %v559
        %v561 = vld [vmem:[%s342] sm:$0x1]
        %v562 = vmul.f32 %v558, %v561
        %v563 = vadd.f32 %v555, %v562
        %s564 = sld [smem:[#allocation7 + $0x281]]
        %v565 = vld [vmem:[%s355] sm:$0xff]
        %v566 = vstv %s564
        %v567 = vmul.f32 %v566, %v565
        %v568 = vadd.f32 %v560, %v567
        %v569 = vld [vmem:[%s342 + $0x1] sm:$0x1]
        %v570 = vmul.f32 %v566, %v569
        %v571 = vadd.f32 %v563, %v570
        %s572 = sld [smem:[#allocation7 + $0x282]]
        %v573 = vld [vmem:[%s364] sm:$0xff]
        %v574 = vstv %s572
        %v575 = vmul.f32 %v574, %v573
        %v576 = vadd.f32 %v568, %v575
        %v577 = vld [vmem:[%s342 + $0x2] sm:$0x1]
        %v578 = vmul.f32 %v574, %v577
        %v579 = vadd.f32 %v571, %v578
        %s580 = sld [smem:[#allocation7 + $0x283]]
        %v581 = vld [vmem:[%s373] sm:$0xff]
        %v582 = vstv %s580
        %v583 = vmul.f32 %v582, %v581
        %v584 = vadd.f32 %v576, %v583
        %v585 = vld [vmem:[%s342 + $0x3] sm:$0x1]
        %v586 = vmul.f32 %v582, %v585
        %v587 = vadd.f32 %v579, %v586
        %588 = vst.msk [vmem:[#allocation2 + $0x28] sm:$0xff] %vm381, %v584
        %v590 = vrot.slane %v587, 1
        %v592 = vadd.f32 %v584, %v590
        %v593 = vmul.f32 %v592, 0.5
        %594 = vst.msk [vmem:[#allocation2 + $0x3e] sm:$0x80] %vm388, %v593
        %s595 = sld [smem:[#allocation8 + $0x6]]
        %v596 = vstv %s595
        %s597 = sld [smem:[#allocation7 + $0x300]]
        %v598 = vld [vmem:[%s287] sm:$0xff]
        %v599 = vstv %s597
        %v600 = vmul.f32 %v599, %v598
        %v601 = vadd.f32 %v596, %v600
        %v602 = vld [vmem:[%s342] sm:$0x1]
        %v603 = vmul.f32 %v599, %v602
        %v604 = vadd.f32 %v596, %v603
        %s605 = sld [smem:[#allocation7 + $0x301]]
        %v606 = vld [vmem:[%s355] sm:$0xff]
        %v607 = vstv %s605
        %v608 = vmul.f32 %v607, %v606
        %v609 = vadd.f32 %v601, %v608
        %v610 = vld [vmem:[%s342 + $0x1] sm:$0x1]
        %v611 = vmul.f32 %v607, %v610
        %v612 = vadd.f32 %v604, %v611
        %s613 = sld [smem:[#allocation7 + $0x302]]
        %v614 = vld [vmem:[%s364] sm:$0xff]
        %v615 = vstv %s613
        %v616 = vmul.f32 %v615, %v614
        %v617 = vadd.f32 %v609, %v616
        %v618 = vld [vmem:[%s342 + $0x2] sm:$0x1]
        %v619 = vmul.f32 %v615, %v618
        %v620 = vadd.f32 %v612, %v619
        %s621 = sld [smem:[#allocation7 + $0x303]]
        %v622 = vld [vmem:[%s373] sm:$0xff]
        %v623 = vstv %s621
        %v624 = vmul.f32 %v623, %v622
        %v625 = vadd.f32 %v617, %v624
        %v626 = vld [vmem:[%s342 + $0x3] sm:$0x1]
        %v627 = vmul.f32 %v623, %v626
        %v628 = vadd.f32 %v620, %v627
        %629 = vst.msk [vmem:[#allocation2 + $0x30] sm:$0xff] %vm381, %v625
        %v631 = vrot.slane %v628, 1
        %v633 = vadd.f32 %v625, %v631
        %v634 = vmul.f32 %v633, 0.5
        %635 = vst.msk [vmem:[#allocation2 + $0x3f] sm:$0x80] %vm388, %v634
        %s636 = sld [smem:[#allocation8 + $0x7]]
        %v637 = vstv %s636
        %s638 = sld [smem:[#allocation7 + $0x380]]
        %v639 = vld [vmem:[%s287] sm:$0xff]
        %v640 = vstv %s638
        %v641 = vmul.f32 %v640, %v639
        %v642 = vadd.f32 %v637, %v641
        %v643 = vld [vmem:[%s342] sm:$0x1]
        %v644 = vmul.f32 %v640, %v643
        %v645 = vadd.f32 %v637, %v644
        %s646 = sld [smem:[#allocation7 + $0x381]]
        %v647 = vld [vmem:[%s355] sm:$0xff]
        %v648 = vstv %s646
        %v649 = vmul.f32 %v648, %v647
        %v650 = vadd.f32 %v642, %v649
        %v651 = vld [vmem:[%s342 + $0x1] sm:$0x1]
        %v652 = vmul.f32 %v648, %v651
        %v653 = vadd.f32 %v645, %v652
        %s654 = sld [smem:[#allocation7 + $0x382]]
        %v655 = vld [vmem:[%s364] sm:$0xff]
        %v656 = vstv %s654
        %v657 = vmul.f32 %v656, %v655
        %v658 = vadd.f32 %v650, %v657
        %v659 = vld [vmem:[%s342 + $0x2] sm:$0x1]
        %v660 = vmul.f32 %v656, %v659
        %v661 = vadd.f32 %v653, %v660
        %s662 = sld [smem:[#allocation7 + $0x383]]
        %v663 = vld [vmem:[%s373] sm:$0xff]
        %v664 = vstv %s662
        %v665 = vmul.f32 %v664, %v663
        %v666 = vadd.f32 %v658, %v665
        %v667 = vld [vmem:[%s342 + $0x3] sm:$0x1]
        %v668 = vmul.f32 %v664, %v667
        %v669 = vadd.f32 %v661, %v668
        %670 = vst.msk [vmem:[#allocation2 + $0x38] sm:$0xff] %vm381, %v666
        %v672 = vrot.slane %v669, 1
        %v674 = vadd.f32 %v666, %v672
        %v675 = vmul.f32 %v674, 0.5
        %676 = vst.msk [vmem:[#allocation2 + $0x40] sm:$0x80] %vm388, %v675
        %v677 = vld [vmem:[#allocation2] sm:$0xff]
        %v678 = vld [vmem:[#allocation2 + $0x8] sm:$0xff]
        %v679 = vld [vmem:[#allocation2 + $0x10] sm:$0xff]
        %v680 = vld [vmem:[#allocation2 + $0x18] sm:$0xff]
        %v681 = vld [vmem:[#allocation2 + $0x20] sm:$0xff]
        %v682 = vld [vmem:[#allocation2 + $0x28] sm:$0xff]
        %v683 = vld [vmem:[#allocation2 + $0x30] sm:$0xff]
        %v684 = vld [vmem:[#allocation2 + $0x38] sm:$0xff]
        %v685 = vld [vmem:[#allocation2 + $0x40] sm:$0xff]
        %v686 = vld [vmem:[%s2] sm:$0xff]
        %v687 = vld [vmem:[%s2 + $0x8] sm:$0xff]
        %v689 = vsel %vm381, %v677, 0
        %v692 = vsel %vm381, %v678, 0
        %v695 = vsel %vm381, %v679, 0
        %v698 = vsel %vm381, %v680, 0
        %v701 = vsel %vm381, %v681, 0
        %v704 = vsel %vm381, %v682, 0
        %v707 = vsel %vm381, %v683, 0
        %v710 = vsel %vm381, %v684, 0
        %v713 = vsel %vm381, %v685, 0
        %715 = vmatpush.msra.mxu0 0.0
        %716 = vmatpush.msra.mxu0 0.0
        %717 = vmatpush.msra.mxu0 0.0
        %718 = vmatpush.msra.mxu0 0.0
        %719 = vmatpush.msra.mxu0 0.0
        %720 = vmatpush.msra.mxu0 0.0
        %721 = vmatpush.msra.mxu0 0.0
        %722 = vmatpush.msra.mxu0 0.0
        %723 = vmatpush.msra.mxu0 0.0
        %724 = vmatpush.msra.mxu0 0.0
        %725 = vmatpush.msra.mxu0 0.0
        %726 = vmatpush.msra.mxu0 0.0
        %727 = vmatpush.msra.mxu0 0.0
        %728 = vmatpush.msra.mxu0 0.0
        %729 = vmatpush.msra.mxu0 %v687
        %730 = vmatpush.msra.mxu0 %v686
        %731 = vmatmul.f32.gmra.mxu0 %v689
        %v732 = vpop.f32.mrf.mxu0
        %v733 = vadd.f32 0.0, %v732
        %734 = vmatmul.f32.gmra.mxu0 %v692
        %v735 = vpop.f32.mrf.mxu0
        %v736 = vadd.f32 0.0, %v735
        %737 = vmatmul.f32.gmra.mxu0 %v695
        %v738 = vpop.f32.mrf.mxu0
        %v739 = vadd.f32 0.0, %v738
        %740 = vmatmul.f32.gmra.mxu0 %v698
        %v741 = vpop.f32.mrf.mxu0
        %v742 = vadd.f32 0.0, %v741
        %743 = vmatmul.f32.gmra.mxu0 %v701
        %v744 = vpop.f32.mrf.mxu0
        %v745 = vadd.f32 0.0, %v744
        %746 = vmatmul.f32.gmra.mxu0 %v704
        %v747 = vpop.f32.mrf.mxu0
        %v748 = vadd.f32 0.0, %v747
        %749 = vmatmul.f32.gmra.mxu0 %v707
        %v750 = vpop.f32.mrf.mxu0
        %v751 = vadd.f32 0.0, %v750
        %752 = vmatmul.f32.gmra.mxu0 %v710
        %v753 = vpop.f32.mrf.mxu0
        %v754 = vadd.f32 0.0, %v753
        %755 = vmatmul.f32.gmra.mxu0 %v713
        %v756 = vpop.f32.mrf.mxu0
        %v757 = vadd.f32 0.0, %v756
        %758 = vdwg.mxu0
        %vm759 = vcmask 252928
        %760 = vst.msk [vmem:[#allocation3] sm:$0xff] %vm759, %v733
        %761 = vst.msk [vmem:[#allocation3 + $0x8] sm:$0xff] %vm759, %v736
        %762 = vst.msk [vmem:[#allocation3 + $0x10] sm:$0xff] %vm759, %v739
        %763 = vst.msk [vmem:[#allocation3 + $0x18] sm:$0xff] %vm759, %v742
        %764 = vst.msk [vmem:[#allocation3 + $0x20] sm:$0xff] %vm759, %v745
        %765 = vst.msk [vmem:[#allocation3 + $0x28] sm:$0xff] %vm759, %v748
        %766 = vst.msk [vmem:[#allocation3 + $0x30] sm:$0xff] %vm759, %v751
        %767 = vst.msk [vmem:[#allocation3 + $0x38] sm:$0xff] %vm759, %v754
        %768 = vst.msk [vmem:[#allocation3 + $0x40] sm:$0xff] %vm759, %v757
        %v769 = vld [vmem:[%s3] sm:$0xff]
        %v770 = vld [vmem:[%s3 + $0x8] sm:$0xff]
        %v771 = vld [vmem:[#allocation3] sm:$0xff]
        %vm772 = vcmask 64512
        %v774 = vsel %vm772, %v769, 0
        %v777 = vsel %vm772, %v770, 0
        %779 = vmatpush.msra.mxu0 0.0
        %780 = vmatpush.msra.mxu0 0.0
        %781 = vmatpush.msra.mxu0 0.0
        %782 = vmatpush.msra.mxu0 0.0
        %783 = vmatpush.msra.mxu0 0.0
        %784 = vmatpush.msra.mxu0 0.0
        %785 = vmatpush.msra.mxu0 0.0
        %786 = vmatpush.msra.mxu0 0.0
        %787 = vmatpush.msra.mxu0 0.0
        %788 = vmatpush.msra.mxu0 0.0
        %789 = vmatpush.msra.mxu0 0.0
        %790 = vmatpush.msra.mxu0 0.0
        %791 = vmatpush.msra.mxu0 0.0
        %792 = vmatpush.msra.mxu0 0.0
        %793 = vmatpush.msra.mxu0 0.0
        %794 = vmatpush.msra.mxu0 %v771
        %795 = vmatmul.f32.gmra.mxu0 %v774
        %v796 = vpop.f32.mrf.mxu0
        %v797 = vadd.f32 0.0, %v796
        %798 = vmatmul.f32.gmra.mxu0 %v777
        %v799 = vpop.f32.mrf.mxu0
        %v800 = vadd.f32 0.0, %v799
        %801 = vdwg.mxu0
        %802 = vst.msk [vmem:[%s334] sm:$0xff] %vm759, %v797
        %803 = vst.msk [vmem:[%s334 + $0x8] sm:$0xff] %vm759, %v800
        %v804 = vld [vmem:[#allocation3 + $0x40] sm:$0x1]
        %vm805 = vcmask 245760
        %806 = vst.msk [vmem:[%s334 + $0xf] sm:$0x1] %vm805, %v804
        %v807 = vld [vmem:[#allocation3 + $0x8] sm:$0xff]
        %808 = vmatpush.msra.mxu0 0.0
        %809 = vmatpush.msra.mxu0 0.0
        %810 = vmatpush.msra.mxu0 0.0
        %811 = vmatpush.msra.mxu0 0.0
        %812 = vmatpush.msra.mxu0 0.0
        %813 = vmatpush.msra.mxu0 0.0
        %814 = vmatpush.msra.mxu0 0.0
        %815 = vmatpush.msra.mxu0 0.0
        %816 = vmatpush.msra.mxu0 0.0
        %817 = vmatpush.msra.mxu0 0.0
        %818 = vmatpush.msra.mxu0 0.0
        %819 = vmatpush.msra.mxu0 0.0
        %820 = vmatpush.msra.mxu0 0.0
        %821 = vmatpush.msra.mxu0 0.0
        %822 = vmatpush.msra.mxu0 0.0
        %823 = vmatpush.msra.mxu0 %v807
        %824 = vmatmul.f32.gmra.mxu0 %v774
        %v825 = vpop.f32.mrf.mxu0
        %v826 = vadd.f32 0.0, %v825
        %827 = vmatmul.f32.gmra.mxu0 %v777
        %v828 = vpop.f32.mrf.mxu0
        %v829 = vadd.f32 0.0, %v828
        %830 = vdwg.mxu0
        %s831 = scalar_lea.vmem %s334, 16 [#allocation10]
        %832 = vst.msk [vmem:[%s831] sm:$0xff] %vm759, %v826
        %833 = vst.msk [vmem:[%s831 + $0x8] sm:$0xff] %vm759, %v829
        %v834 = vld [vmem:[#allocation3 + $0x41] sm:$0x1]
        %835 = vst.msk [vmem:[%s831 + $0xf] sm:$0x1] %vm805, %v834
        %v836 = vld [vmem:[#allocation3 + $0x10] sm:$0xff]
        %837 = vmatpush.msra.mxu0 0.0
        %838 = vmatpush.msra.mxu0 0.0
        %839 = vmatpush.msra.mxu0 0.0
        %840 = vmatpush.msra.mxu0 0.0
        %841 = vmatpush.msra.mxu0 0.0
        %842 = vmatpush.msra.mxu0 0.0
        %843 = vmatpush.msra.mxu0 0.0
        %844 = vmatpush.msra.mxu0 0.0
        %845 = vmatpush.msra.mxu0 0.0
        %846 = vmatpush.msra.mxu0 0.0
        %847 = vmatpush.msra.mxu0 0.0
        %848 = vmatpush.msra.mxu0 0.0
        %849 = vmatpush.msra.mxu0 0.0
        %850 = vmatpush.msra.mxu0 0.0
        %851 = vmatpush.msra.mxu0 0.0
        %852 = vmatpush.msra.mxu0 %v836
        %853 = vmatmul.f32.gmra.mxu0 %v774
        %v854 = vpop.f32.mrf.mxu0
        %v855 = vadd.f32 0.0, %v854
        %856 = vmatmul.f32.gmra.mxu0 %v777
        %v857 = vpop.f32.mrf.mxu0
        %v858 = vadd.f32 0.0, %v857
        %859 = vdwg.mxu0
        %s860 = scalar_lea.vmem %s334, 32 [#allocation10]
        %861 = vst.msk [vmem:[%s860] sm:$0xff] %vm759, %v855
        %862 = vst.msk [vmem:[%s860 + $0x8] sm:$0xff] %vm759, %v858
        %v863 = vld [vmem:[#allocation3 + $0x42] sm:$0x1]
        %864 = vst.msk [vmem:[%s860 + $0xf] sm:$0x1] %vm805, %v863
        %v865 = vld [vmem:[#allocation3 + $0x18] sm:$0xff]
        %866 = vmatpush.msra.mxu0 0.0
        %867 = vmatpush.msra.mxu0 0.0
        %868 = vmatpush.msra.mxu0 0.0
        %869 = vmatpush.msra.mxu0 0.0
        %870 = vmatpush.msra.mxu0 0.0
        %871 = vmatpush.msra.mxu0 0.0
        %872 = vmatpush.msra.mxu0 0.0
        %873 = vmatpush.msra.mxu0 0.0
        %874 = vmatpush.msra.mxu0 0.0
        %875 = vmatpush.msra.mxu0 0.0
        %876 = vmatpush.msra.mxu0 0.0
        %877 = vmatpush.msra.mxu0 0.0
        %878 = vmatpush.msra.mxu0 0.0
        %879 = vmatpush.msra.mxu0 0.0
        %880 = vmatpush.msra.mxu0 0.0
        %881 = vmatpush.msra.mxu0 %v865
        %882 = vmatmul.f32.gmra.mxu0 %v774
        %v883 = vpop.f32.mrf.mxu0
        %v884 = vadd.f32 0.0, %v883
        %885 = vmatmul.f32.gmra.mxu0 %v777
        %v886 = vpop.f32.mrf.mxu0
        %v887 = vadd.f32 0.0, %v886
        %888 = vdwg.mxu0
        %s889 = scalar_lea.vmem %s334, 48 [#allocation10]
        %890 = vst.msk [vmem:[%s889] sm:$0xff] %vm759, %v884
        %891 = vst.msk [vmem:[%s889 + $0x8] sm:$0xff] %vm759, %v887
        %v892 = vld [vmem:[#allocation3 + $0x43] sm:$0x1]
        %893 = vst.msk [vmem:[%s889 + $0xf] sm:$0x1] %vm805, %v892
        %v894 = vld [vmem:[#allocation3 + $0x20] sm:$0xff]
        %895 = vmatpush.msra.mxu0 0.0
        %896 = vmatpush.msra.mxu0 0.0
        %897 = vmatpush.msra.mxu0 0.0
        %898 = vmatpush.msra.mxu0 0.0
        %899 = vmatpush.msra.mxu0 0.0
        %900 = vmatpush.msra.mxu0 0.0
        %901 = vmatpush.msra.mxu0 0.0
        %902 = vmatpush.msra.mxu0 0.0
        %903 = vmatpush.msra.mxu0 0.0
        %904 = vmatpush.msra.mxu0 0.0
        %905 = vmatpush.msra.mxu0 0.0
        %906 = vmatpush.msra.mxu0 0.0
        %907 = vmatpush.msra.mxu0 0.0
        %908 = vmatpush.msra.mxu0 0.0
        %909 = vmatpush.msra.mxu0 0.0
        %910 = vmatpush.msra.mxu0 %v894
        %911 = vmatmul.f32.gmra.mxu0 %v774
        %v912 = vpop.f32.mrf.mxu0
        %v913 = vadd.f32 0.0, %v912
        %914 = vmatmul.f32.gmra.mxu0 %v777
        %v915 = vpop.f32.mrf.mxu0
        %v916 = vadd.f32 0.0, %v915
        %917 = vdwg.mxu0
        %s918 = scalar_lea.vmem %s334, 64 [#allocation10]
        %919 = vst.msk [vmem:[%s918] sm:$0xff] %vm759, %v913
        %920 = vst.msk [vmem:[%s918 + $0x8] sm:$0xff] %vm759, %v916
        %v921 = vld [vmem:[#allocation3 + $0x44] sm:$0x1]
        %922 = vst.msk [vmem:[%s918 + $0xf] sm:$0x1] %vm805, %v921
        %v923 = vld [vmem:[#allocation3 + $0x28] sm:$0xff]
        %924 = vmatpush.msra.mxu0 0.0
        %925 = vmatpush.msra.mxu0 0.0
        %926 = vmatpush.msra.mxu0 0.0
        %927 = vmatpush.msra.mxu0 0.0
        %928 = vmatpush.msra.mxu0 0.0
        %929 = vmatpush.msra.mxu0 0.0
        %930 = vmatpush.msra.mxu0 0.0
        %931 = vmatpush.msra.mxu0 0.0
        %932 = vmatpush.msra.mxu0 0.0
        %933 = vmatpush.msra.mxu0 0.0
        %934 = vmatpush.msra.mxu0 0.0
        %935 = vmatpush.msra.mxu0 0.0
        %936 = vmatpush.msra.mxu0 0.0
        %937 = vmatpush.msra.mxu0 0.0
        %938 = vmatpush.msra.mxu0 0.0
        %939 = vmatpush.msra.mxu0 %v923
        %940 = vmatmul.f32.gmra.mxu0 %v774
        %v941 = vpop.f32.mrf.mxu0
        %v942 = vadd.f32 0.0, %v941
        %943 = vmatmul.f32.gmra.mxu0 %v777
        %v944 = vpop.f32.mrf.mxu0
        %v945 = vadd.f32 0.0, %v944
        %946 = vdwg.mxu0
        %s947 = scalar_lea.vmem %s334, 80 [#allocation10]
        %948 = vst.msk [vmem:[%s947] sm:$0xff] %vm759, %v942
        %949 = vst.msk [vmem:[%s947 + $0x8] sm:$0xff] %vm759, %v945
        %v950 = vld [vmem:[#allocation3 + $0x45] sm:$0x1]
        %951 = vst.msk [vmem:[%s947 + $0xf] sm:$0x1] %vm805, %v950
        %v952 = vld [vmem:[#allocation3 + $0x30] sm:$0xff]
        %953 = vmatpush.msra.mxu0 0.0
        %954 = vmatpush.msra.mxu0 0.0
        %955 = vmatpush.msra.mxu0 0.0
        %956 = vmatpush.msra.mxu0 0.0
        %957 = vmatpush.msra.mxu0 0.0
        %958 = vmatpush.msra.mxu0 0.0
        %959 = vmatpush.msra.mxu0 0.0
        %960 = vmatpush.msra.mxu0 0.0
        %961 = vmatpush.msra.mxu0 0.0
        %962 = vmatpush.msra.mxu0 0.0
        %963 = vmatpush.msra.mxu0 0.0
        %964 = vmatpush.msra.mxu0 0.0
        %965 = vmatpush.msra.mxu0 0.0
        %966 = vmatpush.msra.mxu0 0.0
        %967 = vmatpush.msra.mxu0 0.0
        %968 = vmatpush.msra.mxu0 %v952
        %969 = vmatmul.f32.gmra.mxu0 %v774
        %v970 = vpop.f32.mrf.mxu0
        %v971 = vadd.f32 0.0, %v970
        %972 = vmatmul.f32.gmra.mxu0 %v777
        %v973 = vpop.f32.mrf.mxu0
        %v974 = vadd.f32 0.0, %v973
        %975 = vdwg.mxu0
        %s976 = scalar_lea.vmem %s334, 96 [#allocation10]
        %977 = vst.msk [vmem:[%s976] sm:$0xff] %vm759, %v971
        %978 = vst.msk [vmem:[%s976 + $0x8] sm:$0xff] %vm759, %v974
        %v979 = vld [vmem:[#allocation3 + $0x46] sm:$0x1]
        %980 = vst.msk [vmem:[%s976 + $0xf] sm:$0x1] %vm805, %v979
        %v981 = vld [vmem:[#allocation3 + $0x38] sm:$0xff]
        %982 = vmatpush.msra.mxu0 0.0
        %983 = vmatpush.msra.mxu0 0.0
        %984 = vmatpush.msra.mxu0 0.0
        %985 = vmatpush.msra.mxu0 0.0
        %986 = vmatpush.msra.mxu0 0.0
        %987 = vmatpush.msra.mxu0 0.0
        %988 = vmatpush.msra.mxu0 0.0
        %989 = vmatpush.msra.mxu0 0.0
        %990 = vmatpush.msra.mxu0 0.0
        %991 = vmatpush.msra.mxu0 0.0
        %992 = vmatpush.msra.mxu0 0.0
        %993 = vmatpush.msra.mxu0 0.0
        %994 = vmatpush.msra.mxu0 0.0
        %995 = vmatpush.msra.mxu0 0.0
        %996 = vmatpush.msra.mxu0 0.0
        %997 = vmatpush.msra.mxu0 %v981
        %998 = vmatmul.f32.gmra.mxu0 %v774
        %v999 = vpop.f32.mrf.mxu0
        %v1000 = vadd.f32 0.0, %v999
        %1001 = vmatmul.f32.gmra.mxu0 %v777
        %v1002 = vpop.f32.mrf.mxu0
        %v1003 = vadd.f32 0.0, %v1002
        %1004 = vdwg.mxu0
        %s1005 = scalar_lea.vmem %s334, 112 [#allocation10]
        %1006 = vst.msk [vmem:[%s1005] sm:$0xff] %vm759, %v1000
        %1007 = vst.msk [vmem:[%s1005 + $0x8] sm:$0xff] %vm759, %v1003
        %v1008 = vld [vmem:[#allocation3 + $0x47] sm:$0x1]
        %1009 = vst.msk [vmem:[%s1005 + $0xf] sm:$0x1] %vm805, %v1008
        %s1010 = sand.u32 %s184, 1
        %s1011 = sand.u32 %s184, 1
        %s1012 = smul.addr %s1011, 128
        %s1013 = scalar_lea.vmem [#allocation10], %s1012
        // Predicated region
        $region57: #{tpu_custom_call.1} parent=43 // pred_check
          %p1014 = pneg %p194
        $region58: #{tpu_custom_call.1} parent=43 // pred_check_branch
          %1016 = sbr.rel (%p1014) target = $region60
        $region59: #{tpu_custom_call.1} parent=43 // pred_region
          %s1017 = smul.u32 2, %s27
          %s1018 = smul.addr %s26, 32
          %s1019 = sadd.s32 %s1017, %s1018
          %s1020 = smul.addr %s1019, 8
          %s1021 = scalar_lea.vmem %s6, %s1020
          // Predicated region
          $region61: #{tpu_custom_call.1} parent=59 // pred_check
            _
          $region62: #{tpu_custom_call.1} parent=59 // pred_check_branch
            %1023 = sbr.rel (0) target = $region64
          $region63: #{tpu_custom_call.1} parent=59 // pred_region
            // Predicated region
            $region65: #{tpu_custom_call.1} parent=63 // pred_check
              _
            $region66: #{tpu_custom_call.1} parent=63 // pred_check_branch
              %1025 = sbr.rel (0) target = $region68
            $region67: #{tpu_custom_call.1} parent=63 // pred_region
              // Predicated region
              $region80: #{tpu_custom_call.1} parent=67 // pred_check
                _
              $region81: #{tpu_custom_call.1} parent=67 // pred_check_branch
                %1071 = sbr.rel (0) target = $region83
              $region82: #{tpu_custom_call.1} parent=67 // pred_region
                loop: start=0, step=1, limit=1
                $region84: #{tpu_custom_call.1} parent=82 // loop_pre_header
                  _
                $region85: #{tpu_custom_call.1} parent=82 // loop_header
                  %s1073 = sphi 0, %s1077
                  %p1074 = scmp.ge.s32.totalorder %s1073, 1
                  %s1078 = sphi %s1013, %s1013
                  %s1079 = sphi %s1021, %s1021
                $region86: #{tpu_custom_call.1} parent=82 // loop_header_branch
                  %1076 = sbr.rel (%p1074) target = $region90
                $region87: #{tpu_custom_call.1} parent=82 // loop_body
                  %v1080 = vld [vmem:[%s1078] sm:$0xff]
                  %1081 = vst [vmem:[%s1079] sm:$0xff] %v1080
                  %v1082 = vld [vmem:[%s1078 + $0x8] sm:$0xff]
                  %1083 = vst [vmem:[%s1079 + $0x8] sm:$0xff] %v1082
                  %v1084 = vld [vmem:[%s1078 + $0x10] sm:$0xff]
                  %1085 = vst [vmem:[%s1079 + $0x20] sm:$0xff] %v1084
                  %v1086 = vld [vmem:[%s1078 + $0x18] sm:$0xff]
                  %1087 = vst [vmem:[%s1079 + $0x28] sm:$0xff] %v1086
                  %v1088 = vld [vmem:[%s1078 + $0x20] sm:$0xff]
                  %1089 = vst [vmem:[%s1079 + $0x40] sm:$0xff] %v1088
                  %v1090 = vld [vmem:[%s1078 + $0x28] sm:$0xff]
                  %1091 = vst [vmem:[%s1079 + $0x48] sm:$0xff] %v1090
                  %v1092 = vld [vmem:[%s1078 + $0x30] sm:$0xff]
                  %1093 = vst [vmem:[%s1079 + $0x60] sm:$0xff] %v1092
                  %v1094 = vld [vmem:[%s1078 + $0x38] sm:$0xff]
                  %1095 = vst [vmem:[%s1079 + $0x68] sm:$0xff] %v1094
                  %v1096 = vld [vmem:[%s1078 + $0x40] sm:$0xff]
                  %1097 = vst [vmem:[%s1079 + $0x80] sm:$0xff] %v1096
                  %v1098 = vld [vmem:[%s1078 + $0x48] sm:$0xff]
                  %1099 = vst [vmem:[%s1079 + $0x88] sm:$0xff] %v1098
                  %v1100 = vld [vmem:[%s1078 + $0x50] sm:$0xff]
                  %1101 = vst [vmem:[%s1079 + $0xa0] sm:$0xff] %v1100
                  %v1102 = vld [vmem:[%s1078 + $0x58] sm:$0xff]
                  %1103 = vst [vmem:[%s1079 + $0xa8] sm:$0xff] %v1102
                  %v1104 = vld [vmem:[%s1078 + $0x60] sm:$0xff]
                  %1105 = vst [vmem:[%s1079 + $0xc0] sm:$0xff] %v1104
                  %v1106 = vld [vmem:[%s1078 + $0x68] sm:$0xff]
                  %1107 = vst [vmem:[%s1079 + $0xc8] sm:$0xff] %v1106
                  %v1108 = vld [vmem:[%s1078 + $0x70] sm:$0xff]
                  %1109 = vst [vmem:[%s1079 + $0xe0] sm:$0xff] %v1108
                  %v1110 = vld [vmem:[%s1078 + $0x78] sm:$0xff]
                  %1111 = vst [vmem:[%s1079 + $0xe8] sm:$0xff] %v1110
                $region88: #{tpu_custom_call.1} parent=82 // loop_footer
                  %s1077 = sadd.s32 1, %s1073
                $region89: #{tpu_custom_call.1} parent=82 // loop_footer_branch
                  %1072 = sbr.rel target = $region85
                $region90: #{tpu_custom_call.1} parent=82 // loop_exit
                  _
              $region83: #{tpu_custom_call.1} parent=67 // pred_fallthru
                _
              // Predicated region
              $region91: #{tpu_custom_call.1} parent=67 // pred_check
                _
              $region92: #{tpu_custom_call.1} parent=67 // pred_check_branch
                %1113 = sbr.rel target = $region94
              $region93: #{tpu_custom_call.1} parent=67 // pred_region
                _
              $region94: #{tpu_custom_call.1} parent=67 // pred_fallthru
                _
            $region68: #{tpu_custom_call.1} parent=63 // pred_fallthru
              _
            // Predicated region
            $region69: #{tpu_custom_call.1} parent=63 // pred_check
              _
            $region70: #{tpu_custom_call.1} parent=63 // pred_check_branch
              %1027 = sbr.rel target = $region72
            $region71: #{tpu_custom_call.1} parent=63 // pred_region
              %s1029 = ssub.s32 256, 1
              loop: start=0, step=1, limit=1
              $region73: #{tpu_custom_call.1} parent=71 // loop_pre_header
                _
              $region74: #{tpu_custom_call.1} parent=71 // loop_header
                %s1031 = sphi 0, %s1035
                %p1032 = scmp.ge.s32.totalorder %s1031, 1
                %s1036 = sphi %s1013, %s1013
                %s1037 = sphi %s1021, %s1021
              $region75: #{tpu_custom_call.1} parent=71 // loop_header_branch
                %1034 = sbr.rel (%p1032) target = $region79
              $region76: #{tpu_custom_call.1} parent=71 // loop_body
                %v1038 = vld [vmem:[%s1036] sm:%s1029]
                %1039 = vst [vmem:[%s1037] sm:%s1029] %v1038
                %v1040 = vld [vmem:[%s1036 + $0x8] sm:%s1029]
                %1041 = vst [vmem:[%s1037 + $0x8] sm:%s1029] %v1040
                %v1042 = vld [vmem:[%s1036 + $0x10] sm:%s1029]
                %1043 = vst [vmem:[%s1037 + $0x20] sm:%s1029] %v1042
                %v1044 = vld [vmem:[%s1036 + $0x18] sm:%s1029]
                %1045 = vst [vmem:[%s1037 + $0x28] sm:%s1029] %v1044
                %v1046 = vld [vmem:[%s1036 + $0x20] sm:%s1029]
                %1047 = vst [vmem:[%s1037 + $0x40] sm:%s1029] %v1046
                %v1048 = vld [vmem:[%s1036 + $0x28] sm:%s1029]
                %1049 = vst [vmem:[%s1037 + $0x48] sm:%s1029] %v1048
                %v1050 = vld [vmem:[%s1036 + $0x30] sm:%s1029]
                %1051 = vst [vmem:[%s1037 + $0x60] sm:%s1029] %v1050
                %v1052 = vld [vmem:[%s1036 + $0x38] sm:%s1029]
                %1053 = vst [vmem:[%s1037 + $0x68] sm:%s1029] %v1052
                %v1054 = vld [vmem:[%s1036 + $0x40] sm:%s1029]
                %1055 = vst [vmem:[%s1037 + $0x80] sm:%s1029] %v1054
                %v1056 = vld [vmem:[%s1036 + $0x48] sm:%s1029]
                %1057 = vst [vmem:[%s1037 + $0x88] sm:%s1029] %v1056
                %v1058 = vld [vmem:[%s1036 + $0x50] sm:%s1029]
                %1059 = vst [vmem:[%s1037 + $0xa0] sm:%s1029] %v1058
                %v1060 = vld [vmem:[%s1036 + $0x58] sm:%s1029]
                %1061 = vst [vmem:[%s1037 + $0xa8] sm:%s1029] %v1060
                %v1062 = vld [vmem:[%s1036 + $0x60] sm:%s1029]
                %1063 = vst [vmem:[%s1037 + $0xc0] sm:%s1029] %v1062
                %v1064 = vld [vmem:[%s1036 + $0x68] sm:%s1029]
                %1065 = vst [vmem:[%s1037 + $0xc8] sm:%s1029] %v1064
                %v1066 = vld [vmem:[%s1036 + $0x70] sm:%s1029]
                %1067 = vst [vmem:[%s1037 + $0xe0] sm:%s1029] %v1066
                %v1068 = vld [vmem:[%s1036 + $0x78] sm:%s1029]
                %1069 = vst [vmem:[%s1037 + $0xe8] sm:%s1029] %v1068
              $region77: #{tpu_custom_call.1} parent=71 // loop_footer
                %s1035 = sadd.s32 1, %s1031
              $region78: #{tpu_custom_call.1} parent=71 // loop_footer_branch
                %1030 = sbr.rel target = $region74
              $region79: #{tpu_custom_call.1} parent=71 // loop_exit
                _
            $region72: #{tpu_custom_call.1} parent=63 // pred_fallthru
              _
          $region64: #{tpu_custom_call.1} parent=59 // pred_fallthru
            _
          %1114 = vnop
        $region60: #{tpu_custom_call.1} parent=43 // pred_fallthru
          _
      $region44: #{tpu_custom_call.1} parent=5 // pred_fallthru
        _
      %p1115 = scmp.le.s32.totalorder 2, %s17
      // Predicated region
      $region95: #{tpu_custom_call.1} parent=5 // pred_check
        %p1116 = pneg %p1115
      $region96: #{tpu_custom_call.1} parent=5 // pred_check_branch
        %1118 = sbr.rel (%p1116) target = $region98
      $region97: #{tpu_custom_call.1} parent=5 // pred_region
        %s1119 = ssub.s32 %s17, 2
        // Predicated region
        $region99: #{tpu_custom_call.1} parent=97 // pred_check
          %p1120 = pneg %p200
        $region100: #{tpu_custom_call.1} parent=97 // pred_check_branch
          %1122 = sbr.rel (%p1120) target = $region102
        $region101: #{tpu_custom_call.1} parent=97 // pred_region
          %s1123 = sand.u32 %s185, 1
          %s1124 = sand.u32 %s185, 1
          %s1125 = smul.addr %s1124, 128
          %s1126 = scalar_lea.vmem [#allocation10], %s1125
        $region102: #{tpu_custom_call.1} parent=97 // pred_fallthru
          _
      $region98: #{tpu_custom_call.1} parent=5 // pred_fallthru
        _
    $region6: #{tpu_custom_call.1} parent=1 // loop_footer
      %s21 = sadd.s32 1, %s17
    $region7: #{tpu_custom_call.1} parent=1 // loop_footer_branch
      %16 = sbr.rel target = $region3
    $region8: #{tpu_custom_call.1} parent=1 // loop_exit
      _
    %1127 = vsyncpa [#allocation5], 1
    %s1128 = scalar_lea.sflag [#allocation5], 1
    %1129 = vsyncpa %s1128, 1
    %1130 = vsyncpa [#allocation6], 1
    %s1131 = scalar_lea.sflag [#allocation6], 1
    %1132 = vsyncpa %s1131, 1
    %1133 = vsyncpa [#allocation9], 1

</llo_original>
